<compile_context>
chip_gen: v7x
topology: tpu7x:2x2x1
jax: 0.10.0
libtpu: 0.0.40
codegen_flags: <defaults>
</compile_context>

<pallas_src>
import math

import jax
import jax.numpy as jnp
from jax.experimental import pallas as pl
from jax.experimental.pallas import tpu as pltpu


def _align8(n):
    return (n + 7) // 8 * 8


def _pack_blocks(weight_blocks, bias_blocks, width):
    """Pack parameters into one (rows, width) f32 slab.

    Weight blocks start at 8-aligned rows (they feed the MXU); row-vector
    biases are packed densely, one row each (they only feed VPU adds).
    Returns (slab, layout) with layout[name] = (row_offset, nrows, ncols).
    """
    layout = {}
    row = 0
    for name, arr in weight_blocks:
        row = _align8(row)
        layout[name] = (row, arr.shape[0], arr.shape[1])
        row += arr.shape[0]
    row = _align8(row)
    for name, arr in bias_blocks:
        layout[name] = (row, 1, arr.shape[1])
        row += 1
    slab = jnp.zeros((_align8(row), width), jnp.float32)
    for name, arr in list(weight_blocks) + list(bias_blocks):
        r0, nr, nc = layout[name]
        slab = slab.at[r0:r0 + nr, :nc].set(jnp.asarray(arr, jnp.float32))
    return slab, layout


# ----------------------------------------------------------------------------
# Kernel: whole forward pass (linear / conv / pool / LSTM cell / MLP / softmax)
# in a single grid-less Pallas invocation, all operands resident in VMEM.
# ----------------------------------------------------------------------------
def _make_kernel(layout, P, M, T, H):
    H2 = 2 * H

    def kernel(x_sp_t_ref, old_p_ref, mkt_ref, slab_ref, wg_ref, out_ref, vtap_ref):
        f32 = jnp.float32
        relu = lambda v: jnp.maximum(v, 0.0)
        sigmoid = lambda v: 1.0 / (1.0 + jnp.exp(-v))
        dot = lambda a, b: jnp.dot(a, b, preferred_element_type=f32)

        def ld(name):                       # static sub-view of the param slab
            r0, nr, nc = layout[name]
            return slab_ref[r0:r0 + nr, 0:nc]

        old_p = old_p_ref[...]                                      # (1, P)

        # ---- stock branch: Linear(T, 5T), kept transposed as (5T, P) ----
        y_t = dot(ld("w_ls"), x_sp_t_ref[...]) + ld("b_ls")         # (5T, P)

        # Conv1d(in=5T, out=1, k=3, stride=1, padding=1): all 3 taps fused into
        # ONE matmul; rows recovered through a small VMEM scratch.
        vtap_ref[...] = dot(ld("wc"), y_t)                          # (3, P)
        v0 = vtap_ref[0:1, :]
        v1 = vtap_ref[1:2, :]
        v2 = vtap_ref[2:3, :]

        # in-kernel shift matrices / boundary masks (no parameter DMAs)
        row_i = jax.lax.broadcasted_iota(jnp.int32, (P, P), 0)
        col_i = jax.lax.broadcasted_iota(jnp.int32, (P, P), 1)
        s_r = (row_i + 1 == col_i).astype(f32)                      # (v@s_r)[j] = v[j-1]
        s_l = (row_i - 1 == col_i).astype(f32)                      # (v@s_l)[j] = v[j+1]
        lane = jax.lax.broadcasted_iota(jnp.int32, (1, P), 1)

        conv = ld("bc") + dot(v0, s_r) + v1 + dot(v2, s_l)          # (1, P)

        # MaxPool1d(k=3, stride=1, padding=1) -> -inf padding at the borders
        left = jnp.where(lane == 0, f32(-1e30), dot(conv, s_r))
        right = jnp.where(lane == P - 1, f32(-1e30), dot(conv, s_l))
        pool = jnp.maximum(jnp.maximum(left, conv), right)          # (1, P)

        # ---- embed the three branches to hidden size H ----
        w_sp = ld("w_sp")
        b_sp = ld("b_sp")
        h_stock = relu(dot(pool, w_sp) + b_sp)                      # (1, H)
        h_port = relu(dot(old_p, w_sp) + b_sp)                      # (1, H)
        h_mkt = relu(dot(mkt_ref[...], ld("w_mp")) + ld("b_mp"))    # (1, H)

        # fc1 over cat([h_stock, h_port, h_mkt]) == sum of three partial matmuls
        r1, _, _ = layout["w1"]
        x1 = relu(dot(h_stock, slab_ref[r1:r1 + H, 0:H])
                  + dot(h_port, slab_ref[r1 + H:r1 + 2 * H, 0:H])
                  + dot(h_mkt, slab_ref[r1 + 2 * H:r1 + 3 * H, 0:H])
                  + ld("b1"))                                       # (1, H)

        # ---- single-step, single-layer LSTM, zero initial state ----
        # i/g/o gates fused into ONE matmul (forget gate dropped entirely: it
        # only multiplies the zero initial cell state).  Gates are packed at
        # 2H-lane spacing; the slices below feed only EUP/VPU ops, so the
        # (cheap, XLU-coissued) lane realignment is fine.
        gates = dot(x1, wg_ref[0:H, :]) + wg_ref[H:H + 1, :]        # (1, 3*2H)
        gi = sigmoid(gates[:, 0:H2])
        gg = jnp.tanh(gates[:, H2:2 * H2])
        go = sigmoid(gates[:, 2 * H2:3 * H2])
        h1 = go * jnp.tanh(gi * gg)                                 # (1, 2H)

        x2 = relu(dot(h1, ld("w2")) + ld("b2"))                     # (1, H)
        x3 = dot(x2, ld("w3")) + ld("b3") - old_p                   # (1, P)
        x4 = relu(dot(x3, ld("w4")) + ld("b4"))                     # (1, 3P)
        x5 = relu(dot(x4, ld("w5")) + ld("b5")) + old_p             # (1, P)
        x6 = relu(dot(x5, ld("w6")) + ld("b6"))                     # (1, 2P)
        x7 = dot(x6, ld("w7")) + ld("b7")                           # (1, P)

        # softmax over the portefolio axis (EUP reciprocal + one Newton step)
        m = jnp.max(x7, axis=-1, keepdims=True)
        e = jnp.exp(x7 - m)
        s = jnp.sum(e, axis=-1, keepdims=True)
        rcp = pl.reciprocal(s, approx=True)
        rcp = rcp * (2.0 - s * rcp)
        out_ref[...] = e * rcp

    return kernel


# ----------------------------------------------------------------------------
# One-time parameter packing + jitted forward closure
# ----------------------------------------------------------------------------
def make_forward_fn(params, P, M, T, H):
    f32 = jnp.float32
    T5, H2 = 5 * T, 2 * H
    # NOTE: the torch module hard-codes `view(-1, 64)` => requires 2*H == 64.

    def t(x):
        return jnp.asarray(x, f32).T

    weight_blocks = [
        ("w_ls", jnp.asarray(params["ls_w"], f32)),                  # (5T, T)
        ("b_ls", jnp.asarray(params["ls_b"], f32).reshape(T5, 1)),   # column bias
        ("wc", jnp.asarray(params["conv_w"], f32)[0].T),             # (3, 5T)
        ("w_sp", t(params["sp_w"])),                                 # (P, H)
        ("w_mp", t(params["mp_w"])),                                 # (M, H)
        ("w1", t(params["fc1_w"])),                                  # (3H, H)
        ("w2", t(params["fc2_w"])),                                  # (2H, H)
        ("w3", t(params["fc3_w"])),                                  # (H, P)
        ("w4", t(params["fc4_w"])),                                  # (P, 3P)
        ("w5", t(params["fc5_w"])),                                  # (3P, P)
        ("w6", t(params["fc6_w"])),                                  # (P, 2P)
        ("w7", t(params["fc7_w"])),                                  # (2P, P)
    ]
    bias_blocks = [
        ("bc", jnp.asarray(params["conv_b"], f32).reshape(1, 1)),
        ("b_sp", jnp.asarray(params["sp_b"], f32).reshape(1, H)),
        ("b_mp", jnp.asarray(params["mp_b"], f32).reshape(1, H)),
        ("b1", jnp.asarray(params["fc1_b"], f32).reshape(1, H)),
        ("b2", jnp.asarray(params["fc2_b"], f32).reshape(1, H)),
        ("b3", jnp.asarray(params["fc3_b"], f32).reshape(1, P)),
        ("b4", jnp.asarray(params["fc4_b"], f32).reshape(1, 3 * P)),
        ("b5", jnp.asarray(params["fc5_b"], f32).reshape(1, P)),
        ("b6", jnp.asarray(params["fc6_b"], f32).reshape(1, 2 * P)),
        ("b7", jnp.asarray(params["fc7_b"], f32).reshape(1, P)),
    ]
    slab_width = max(arr.shape[1] for _, arr in weight_blocks + bias_blocks)
    slab, layout = _pack_blocks(weight_blocks, bias_blocks, slab_width)

    # LSTM i/g/o gates packed into one (H+1, 3*2H) slab; row H is the bias
    # (bias_ih + bias_hh).  Forget gate is dropped (zero initial cell state).
    wih = jnp.asarray(params["lstm_wih"], f32)                       # (8H, H): [i;f;g;o]
    bl = jnp.asarray(params["lstm_bih"], f32) + jnp.asarray(params["lstm_bhh"], f32)
    wg = jnp.zeros((H + 1, 3 * H2), f32)
    for blk, gate in enumerate((0, 2, 3)):                           # i, g, o
        wg = wg.at[0:H, blk * H2:(blk + 1) * H2].set(wih[gate * H2:(gate + 1) * H2].T)
        wg = wg.at[H, blk * H2:(blk + 1) * H2].set(bl[gate * H2:(gate + 1) * H2])

    kernel = _make_kernel(layout, P, M, T, H)
    vmem = pl.BlockSpec(memory_space=pltpu.MemorySpace.VMEM)
    pallas_fn = pl.pallas_call(
        kernel,
        out_shape=jax.ShapeDtypeStruct((1, P), f32),
        in_specs=[vmem] * 5,
        out_specs=vmem,
        scratch_shapes=[pltpu.VMEM((3, P), f32)],
    )

    @jax.jit
    def forward(stock_predictions, old_portefolio, market_data):
        x_sp_t = jnp.asarray(stock_predictions, f32).T               # (T, P)
        old_p = jnp.asarray(old_portefolio, f32).reshape(1, P)
        mkt = jnp.asarray(market_data, f32).reshape(1, M)
        return pallas_fn(x_sp_t, old_p, mkt, slab, wg)[0]            # (P,)

    return forward


# ----------------------------------------------------------------------------
# Deterministic parameter init (shapes exactly match the nn.Module's __init__)
# ----------------------------------------------------------------------------
def init_params(key, P, M, T, H):
    keys = iter(jax.random.split(key, 32))

    def lin(fan_in, fan_out):
        b = 1.0 / math.sqrt(fan_in)
        w = jax.random.uniform(next(keys), (fan_out, fan_in), jnp.float32, -b, b)
        bb = jax.random.uniform(next(keys), (fan_out,), jnp.float32, -b, b)
        return w, bb

    p = {}
    p["ls_w"], p["ls_b"] = lin(T, 5 * T)                     # linear_layer_stocks
    cb = 1.0 / math.sqrt(5 * T * 3)
    p["conv_w"] = jax.random.uniform(next(keys), (1, 5 * T, 3), jnp.float32, -cb, cb)
    p["conv_b"] = jax.random.uniform(next(keys), (1,), jnp.float32, -cb, cb)
    p["sp_w"], p["sp_b"] = lin(P, H)                         # linear_layer_stocks_portefolio
    p["mp_w"], p["mp_b"] = lin(M, H)                         # linear_layer_market_portefolio
    p["fc1_w"], p["fc1_b"] = lin(3 * H, H)
    lb = 1.0 / math.sqrt(2 * H)                              # LSTM(H, 2H, num_layers=1)
    p["lstm_wih"] = jax.random.uniform(next(keys), (8 * H, H), jnp.float32, -lb, lb)
    p["lstm_whh"] = jax.random.uniform(next(keys), (8 * H, 2 * H), jnp.float32, -lb, lb)
    p["lstm_bih"] = jax.random.uniform(next(keys), (8 * H,), jnp.float32, -lb, lb)
    p["lstm_bhh"] = jax.random.uniform(next(keys), (8 * H,), jnp.float32, -lb, lb)
    p["fc2_w"], p["fc2_b"] = lin(2 * H, H)
    p["fc3_w"], p["fc3_b"] = lin(H, P)
    p["fc4_w"], p["fc4_b"] = lin(P, 3 * P)
    p["fc5_w"], p["fc5_b"] = lin(3 * P, P)
    p["fc6_w"], p["fc6_b"] = lin(P, 2 * P)
    p["fc7_w"], p["fc7_b"] = lin(2 * P, P)
    return p


# ----------------------------------------------------------------------------
# Pure-JAX reference (mirrors the PyTorch forward exactly, eval mode)
# ----------------------------------------------------------------------------
def reference_forward(params, sp, old_p, mkt, P, M, T, H):
    y = sp @ params["ls_w"].T + params["ls_b"]               # (P, 5T)
    y_t = y.T                                                # (5T, P)
    w = params["conv_w"][0]                                  # (5T, 3)
    ypad = jnp.pad(y_t, ((0, 0), (1, 1)))
    conv = jnp.stack([jnp.sum(w * ypad[:, j:j + 3]) for j in range(P)]) + params["conv_b"][0]
    cpad = jnp.pad(conv, (1, 1), constant_values=-jnp.inf)
    pool = jnp.stack([jnp.max(cpad[j:j + 3]) for j in range(P)])

    h_s = jax.nn.relu(pool @ params["sp_w"].T + params["sp_b"])
    h_p = jax.nn.relu(old_p @ params["sp_w"].T + params["sp_b"])
    h_m = jax.nn.relu(mkt @ params["mp_w"].T + params["mp_b"])
    x = jnp.concatenate([h_s, h_p, h_m])
    x = jax.nn.relu(x @ params["fc1_w"].T + params["fc1_b"])

    gates = x @ params["lstm_wih"].T + params["lstm_bih"] + params["lstm_bhh"]
    H2 = 2 * H
    gi = jax.nn.sigmoid(gates[0 * H2:1 * H2])
    gg = jnp.tanh(gates[2 * H2:3 * H2])
    go = jax.nn.sigmoid(gates[3 * H2:4 * H2])
    h = go * jnp.tanh(gi * gg)

    x = jax.nn.relu(h @ params["fc2_w"].T + params["fc2_b"])
    x = x @ params["fc3_w"].T + params["fc3_b"]
    x = x - old_p
    x = jax.nn.relu(x @ params["fc4_w"].T + params["fc4_b"])
    x = jax.nn.relu(x @ params["fc5_w"].T + params["fc5_b"])
    x = x + old_p
    x = jax.nn.relu(x @ params["fc6_w"].T + params["fc6_b"])
    x = x @ params["fc7_w"].T + params["fc7_b"]
    return jax.nn.softmax(x, axis=0)


if __name__ == "__main__":
    # hidden_size must be 32: the forward reshapes the LSTM output to exactly 64 = 2*H
    P, M, T, H = 8, 6, 8, 32      # portefolio_size, market_data_size, time_horizon, hidden_size
    # num_layers = 1 (single LSTM layer)

    key = jax.random.PRNGKey(0)
    kp, k1, k2, k3 = jax.random.split(key, 4)
    params = init_params(kp, P, M, T, H)

    stock_predictions = jax.random.normal(k1, (P, T), jnp.float32)
    old_portefolio = jax.nn.softmax(jax.random.normal(k2, (P,), jnp.float32))
    market_data = jax.random.normal(k3, (M,), jnp.float32)

    # parameter packing / glue is hoisted: done exactly once here
    forward = make_forward_fn(params, P, M, T, H)

    out = forward(stock_predictions, old_portefolio, market_data)
    out = jax.block_until_ready(out)

    ref = reference_forward(params, stock_predictions, old_portefolio, market_data, P, M, T, H)

    assert out.shape == (P,)
    assert bool(jnp.all(jnp.isfinite(out)))
    assert abs(float(jnp.sum(out)) - 1.0) < 1e-3
    assert bool(jnp.allclose(out, ref, atol=2e-3, rtol=2e-3)), (out, ref)
    print("KERNEL_OK")
</pallas_src>

<mosaic_0001>
module attributes {stable_mosaic.version = 11 : i64} {
  func.func @kernel(%arg0: memref<8x8xf32, #tpu.memory_space<vmem>>, %arg1: memref<1x8xf32, #tpu.memory_space<vmem>>, %arg2: memref<1x6xf32, #tpu.memory_space<vmem>>, %arg3: memref<368x40xf32, #tpu.memory_space<vmem>>, %arg4: memref<33x192xf32, #tpu.memory_space<vmem>>, %arg5: memref<1x8xf32, #tpu.memory_space<vmem>>, %arg6: memref<3x8xf32, #tpu.memory_space<vmem>>) attributes {dimension_semantics = [], scalar_prefetch = 0 : i64, scratch_operands = 1 : i64, tpu.core_type = #tpu.core_type<tc>} {
    %c0 = arith.constant 0 : index
    %c0_0 = arith.constant 0 : index
    %0 = vector.load %arg1[%c0, %c0_0] : memref<1x8xf32, #tpu.memory_space<vmem>>, vector<1x8xf32>
    %c0_1 = arith.constant 0 : index
    %c0_2 = arith.constant 0 : index
    %1 = vector.load %arg3[%c0_1, %c0_2] : memref<368x40xf32, #tpu.memory_space<vmem>>, vector<40x8xf32>
    %c0_3 = arith.constant 0 : index
    %c0_4 = arith.constant 0 : index
    %2 = vector.load %arg0[%c0_3, %c0_4] : memref<8x8xf32, #tpu.memory_space<vmem>>, vector<8x8xf32>
    %cst = arith.constant dense<0.000000e+00> : vector<40x8xf32>
    %3 = tpu.matmul %1, %2, %cst {dimension_numbers = #tpu.dot_dimension_numbers<[1], [0], [0], [1], [0, 0, 1, 1], [], []>} : vector<40x8xf32>, vector<8x8xf32>, vector<40x8xf32> -> vector<40x8xf32>
    %c40 = arith.constant 40 : index
    %c0_5 = arith.constant 0 : index
    %4 = vector.load %arg3[%c40, %c0_5] : memref<368x40xf32, #tpu.memory_space<vmem>>, vector<40x1xf32>
    %5 = vector.broadcast %4 : vector<40x1xf32> to vector<40x8xf32>
    %6 = arith.addf %3, %5 : vector<40x8xf32>
    %c80 = arith.constant 80 : index
    %c0_6 = arith.constant 0 : index
    %7 = vector.load %arg3[%c80, %c0_6] : memref<368x40xf32, #tpu.memory_space<vmem>>, vector<3x40xf32>
    %cst_7 = arith.constant dense<0.000000e+00> : vector<3x8xf32>
    %8 = tpu.matmul %7, %6, %cst_7 {dimension_numbers = #tpu.dot_dimension_numbers<[1], [0], [0], [1], [0, 0, 1, 1], [], []>} : vector<3x40xf32>, vector<40x8xf32>, vector<3x8xf32> -> vector<3x8xf32>
    %c0_8 = arith.constant 0 : index
    %c0_9 = arith.constant 0 : index
    %9 = vector.load %arg6[%c0_8, %c0_9] : memref<3x8xf32, #tpu.memory_space<vmem>>, vector<3x8xf32>
    tpu.vector_store %arg6[%c0_8, %c0_9], %8 {strides = array<i32>} : memref<3x8xf32, #tpu.memory_space<vmem>>, vector<3x8xf32>,
    %c0_10 = arith.constant 0 : index
    %c0_11 = arith.constant 0 : index
    %10 = vector.load %arg6[%c0_10, %c0_11] : memref<3x8xf32, #tpu.memory_space<vmem>>, vector<1x8xf32>
    %c1 = arith.constant 1 : index
    %c0_12 = arith.constant 0 : index
    %11 = vector.load %arg6[%c1, %c0_12] : memref<3x8xf32, #tpu.memory_space<vmem>>, vector<1x8xf32>
    %c2 = arith.constant 2 : index
    %c0_13 = arith.constant 0 : index
    %12 = vector.load %arg6[%c2, %c0_13] : memref<3x8xf32, #tpu.memory_space<vmem>>, vector<1x8xf32>
    %13 = tpu.iota {dimensions = array<i32: 0>} : vector<8x8xi32>
    %14 = tpu.iota {dimensions = array<i32: 1>} : vector<8x8xi32>
    %c1_i32 = arith.constant 1 : i32
    %15 = vector.broadcast %c1_i32 : i32 to vector<8x8xi32>
    %16 = arith.addi %13, %15 : vector<8x8xi32>
    %17 = arith.cmpi eq, %16, %14 : vector<8x8xi32>
    %18 = arith.extui %17 : vector<8x8xi1> to vector<8x8xi32>
    %19 = arith.sitofp %18 : vector<8x8xi32> to vector<8x8xf32>
    %c1_i32_14 = arith.constant 1 : i32
    %20 = vector.broadcast %c1_i32_14 : i32 to vector<8x8xi32>
    %21 = arith.subi %13, %20 : vector<8x8xi32>
    %22 = arith.cmpi eq, %21, %14 : vector<8x8xi32>
    %23 = arith.extui %22 : vector<8x8xi1> to vector<8x8xi32>
    %24 = arith.sitofp %23 : vector<8x8xi32> to vector<8x8xf32>
    %25 = tpu.iota {dimensions = array<i32: 1>} : vector<1x8xi32>
    %c352 = arith.constant 352 : index
    %c0_15 = arith.constant 0 : index
    %26 = vector.load %arg3[%c352, %c0_15] : memref<368x40xf32, #tpu.memory_space<vmem>>, vector<1x1xf32>
    %cst_16 = arith.constant dense<0.000000e+00> : vector<1x8xf32>
    %27 = tpu.matmul %10, %19, %cst_16 {dimension_numbers = #tpu.dot_dimension_numbers<[1], [0], [0], [1], [0, 0, 1, 1], [], []>} : vector<1x8xf32>, vector<8x8xf32>, vector<1x8xf32> -> vector<1x8xf32>
    %28 = vector.broadcast %26 : vector<1x1xf32> to vector<1x8xf32>
    %29 = arith.addf %28, %27 : vector<1x8xf32>
    %30 = arith.addf %29, %11 : vector<1x8xf32>
    %cst_17 = arith.constant dense<0.000000e+00> : vector<1x8xf32>
    %31 = tpu.matmul %12, %24, %cst_17 {dimension_numbers = #tpu.dot_dimension_numbers<[1], [0], [0], [1], [0, 0, 1, 1], [], []>} : vector<1x8xf32>, vector<8x8xf32>, vector<1x8xf32> -> vector<1x8xf32>
    %32 = arith.addf %30, %31 : vector<1x8xf32>
    %c0_i32 = arith.constant 0 : i32
    %33 = vector.broadcast %c0_i32 : i32 to vector<1x8xi32>
    %34 = arith.cmpi eq, %25, %33 : vector<1x8xi32>
    %cst_18 = arith.constant dense<0.000000e+00> : vector<1x8xf32>
    %35 = tpu.matmul %32, %19, %cst_18 {dimension_numbers = #tpu.dot_dimension_numbers<[1], [0], [0], [1], [0, 0, 1, 1], [], []>} : vector<1x8xf32>, vector<8x8xf32>, vector<1x8xf32> -> vector<1x8xf32>
    %cst_19 = arith.constant -1.000000e+30 : f32
    %36 = vector.broadcast %cst_19 : f32 to vector<1x8xf32>
    %37 = arith.select %34, %36, %35 : vector<1x8xi1>, vector<1x8xf32>
    %c7_i32 = arith.constant 7 : i32
    %38 = vector.broadcast %c7_i32 : i32 to vector<1x8xi32>
    %39 = arith.cmpi eq, %25, %38 : vector<1x8xi32>
    %cst_20 = arith.constant dense<0.000000e+00> : vector<1x8xf32>
    %40 = tpu.matmul %32, %24, %cst_20 {dimension_numbers = #tpu.dot_dimension_numbers<[1], [0], [0], [1], [0, 0, 1, 1], [], []>} : vector<1x8xf32>, vector<8x8xf32>, vector<1x8xf32> -> vector<1x8xf32>
    %cst_21 = arith.constant -1.000000e+30 : f32
    %41 = vector.broadcast %cst_21 : f32 to vector<1x8xf32>
    %42 = arith.select %39, %41, %40 : vector<1x8xi1>, vector<1x8xf32>
    %43 = arith.maximumf %37, %32 : vector<1x8xf32>
    %44 = arith.maximumf %43, %42 : vector<1x8xf32>
    %c88 = arith.constant 88 : index
    %c0_22 = arith.constant 0 : index
    %45 = vector.load %arg3[%c88, %c0_22] : memref<368x40xf32, #tpu.memory_space<vmem>>, vector<8x32xf32>
    %c353 = arith.constant 353 : index
    %c0_23 = arith.constant 0 : index
    %46 = vector.load %arg3[%c353, %c0_23] : memref<368x40xf32, #tpu.memory_space<vmem>>, vector<1x32xf32>
    %cst_24 = arith.constant dense<0.000000e+00> : vector<1x32xf32>
    %47 = tpu.matmul %44, %45, %cst_24 {dimension_numbers = #tpu.dot_dimension_numbers<[1], [0], [0], [1], [0, 0, 1, 1], [], []>} : vector<1x8xf32>, vector<8x32xf32>, vector<1x32xf32> -> vector<1x32xf32>
    %48 = arith.addf %47, %46 : vector<1x32xf32>
    %cst_25 = arith.constant 0.000000e+00 : f32
    %49 = vector.broadcast %cst_25 : f32 to vector<1x32xf32>
    %50 = arith.maximumf %48, %49 : vector<1x32xf32>
    %cst_26 = arith.constant dense<0.000000e+00> : vector<1x32xf32>
    %51 = tpu.matmul %0, %45, %cst_26 {dimension_numbers = #tpu.dot_dimension_numbers<[1], [0], [0], [1], [0, 0, 1, 1], [], []>} : vector<1x8xf32>, vector<8x32xf32>, vector<1x32xf32> -> vector<1x32xf32>
    %52 = arith.addf %51, %46 : vector<1x32xf32>
    %cst_27 = arith.constant 0.000000e+00 : f32
    %53 = vector.broadcast %cst_27 : f32 to vector<1x32xf32>
    %54 = arith.maximumf %52, %53 : vector<1x32xf32>
    %c0_28 = arith.constant 0 : index
    %c0_29 = arith.constant 0 : index
    %55 = vector.load %arg2[%c0_28, %c0_29] : memref<1x6xf32, #tpu.memory_space<vmem>>, vector<1x6xf32>
    %c96 = arith.constant 96 : index
    %c0_30 = arith.constant 0 : index
    %56 = vector.load %arg3[%c96, %c0_30] : memref<368x40xf32, #tpu.memory_space<vmem>>, vector<6x32xf32>
    %cst_31 = arith.constant dense<0.000000e+00> : vector<1x32xf32>
    %57 = tpu.matmul %55, %56, %cst_31 {dimension_numbers = #tpu.dot_dimension_numbers<[1], [0], [0], [1], [0, 0, 1, 1], [], []>} : vector<1x6xf32>, vector<6x32xf32>, vector<1x32xf32> -> vector<1x32xf32>
    %c354 = arith.constant 354 : index
    %c0_32 = arith.constant 0 : index
    %58 = vector.load %arg3[%c354, %c0_32] : memref<368x40xf32, #tpu.memory_space<vmem>>, vector<1x32xf32>
    %59 = arith.addf %57, %58 : vector<1x32xf32>
    %cst_33 = arith.constant 0.000000e+00 : f32
    %60 = vector.broadcast %cst_33 : f32 to vector<1x32xf32>
    %61 = arith.maximumf %59, %60 : vector<1x32xf32>
    %c104 = arith.constant 104 : index
    %c0_34 = arith.constant 0 : index
    %62 = vector.load %arg3[%c104, %c0_34] : memref<368x40xf32, #tpu.memory_space<vmem>>, vector<32x32xf32>
    %cst_35 = arith.constant dense<0.000000e+00> : vector<1x32xf32>
    %63 = tpu.matmul %50, %62, %cst_35 {dimension_numbers = #tpu.dot_dimension_numbers<[1], [0], [0], [1], [0, 0, 1, 1], [], []>} : vector<1x32xf32>, vector<32x32xf32>, vector<1x32xf32> -> vector<1x32xf32>
    %c136 = arith.constant 136 : index
    %c0_36 = arith.constant 0 : index
    %64 = vector.load %arg3[%c136, %c0_36] : memref<368x40xf32, #tpu.memory_space<vmem>>, vector<32x32xf32>
    %cst_37 = arith.constant dense<0.000000e+00> : vector<1x32xf32>
    %65 = tpu.matmul %54, %64, %cst_37 {dimension_numbers = #tpu.dot_dimension_numbers<[1], [0], [0], [1], [0, 0, 1, 1], [], []>} : vector<1x32xf32>, vector<32x32xf32>, vector<1x32xf32> -> vector<1x32xf32>
    %66 = arith.addf %63, %65 : vector<1x32xf32>
    %c168 = arith.constant 168 : index
    %c0_38 = arith.constant 0 : index
    %67 = vector.load %arg3[%c168, %c0_38] : memref<368x40xf32, #tpu.memory_space<vmem>>, vector<32x32xf32>
    %cst_39 = arith.constant dense<0.000000e+00> : vector<1x32xf32>
    %68 = tpu.matmul %61, %67, %cst_39 {dimension_numbers = #tpu.dot_dimension_numbers<[1], [0], [0], [1], [0, 0, 1, 1], [], []>} : vector<1x32xf32>, vector<32x32xf32>, vector<1x32xf32> -> vector<1x32xf32>
    %69 = arith.addf %66, %68 : vector<1x32xf32>
    %c355 = arith.constant 355 : index
    %c0_40 = arith.constant 0 : index
    %70 = vector.load %arg3[%c355, %c0_40] : memref<368x40xf32, #tpu.memory_space<vmem>>, vector<1x32xf32>
    %71 = arith.addf %69, %70 : vector<1x32xf32>
    %cst_41 = arith.constant 0.000000e+00 : f32
    %72 = vector.broadcast %cst_41 : f32 to vector<1x32xf32>
    %73 = arith.maximumf %71, %72 : vector<1x32xf32>
    %c0_42 = arith.constant 0 : index
    %c0_43 = arith.constant 0 : index
    %74 = vector.load %arg4[%c0_42, %c0_43] : memref<33x192xf32, #tpu.memory_space<vmem>>, vector<32x192xf32>
    %cst_44 = arith.constant dense<0.000000e+00> : vector<1x192xf32>
    %75 = tpu.matmul %73, %74, %cst_44 {dimension_numbers = #tpu.dot_dimension_numbers<[1], [0], [0], [1], [0, 0, 1, 1], [], []>} : vector<1x32xf32>, vector<32x192xf32>, vector<1x192xf32> -> vector<1x192xf32>
    %c32 = arith.constant 32 : index
    %c0_45 = arith.constant 0 : index
    %76 = vector.load %arg4[%c32, %c0_45] : memref<33x192xf32, #tpu.memory_space<vmem>>, vector<1x192xf32>
    %77 = arith.addf %75, %76 : vector<1x192xf32>
    %78 = vector.extract_strided_slice %77 {offsets = [0, 0], sizes = [1, 64], strides = [1, 1]} : vector<1x192xf32> to vector<1x64xf32>
    %cst_46 = arith.constant 0.000000e+00 : f32
    %79 = vector.broadcast %cst_46 : f32 to vector<1x64xf32>
    %80 = arith.subf %79, %78 : vector<1x64xf32>
    %81 = math.exp %80 : vector<1x64xf32>
    %cst_47 = arith.constant 1.000000e+00 : f32
    %82 = vector.broadcast %cst_47 : f32 to vector<1x64xf32>
    %83 = arith.addf %82, %81 : vector<1x64xf32>
    %cst_48 = arith.constant 1.000000e+00 : f32
    %84 = vector.broadcast %cst_48 : f32 to vector<1x64xf32>
    %85 = arith.divf %84, %83 : vector<1x64xf32>
    %86 = vector.extract_strided_slice %77 {offsets = [0, 64], sizes = [1, 64], strides = [1, 1]} : vector<1x192xf32> to vector<1x64xf32>
    %87 = math.tanh %86 : vector<1x64xf32>
    %88 = vector.extract_strided_slice %77 {offsets = [0, 128], sizes = [1, 64], strides = [1, 1]} : vector<1x192xf32> to vector<1x64xf32>
    %cst_49 = arith.constant 0.000000e+00 : f32
    %89 = vector.broadcast %cst_49 : f32 to vector<1x64xf32>
    %90 = arith.subf %89, %88 : vector<1x64xf32>
    %91 = math.exp %90 : vector<1x64xf32>
    %cst_50 = arith.constant 1.000000e+00 : f32
    %92 = vector.broadcast %cst_50 : f32 to vector<1x64xf32>
    %93 = arith.addf %92, %91 : vector<1x64xf32>
    %cst_51 = arith.constant 1.000000e+00 : f32
    %94 = vector.broadcast %cst_51 : f32 to vector<1x64xf32>
    %95 = arith.divf %94, %93 : vector<1x64xf32>
    %96 = arith.mulf %85, %87 : vector<1x64xf32>
    %97 = math.tanh %96 : vector<1x64xf32>
    %98 = arith.mulf %95, %97 : vector<1x64xf32>
    %c200 = arith.constant 200 : index
    %c0_52 = arith.constant 0 : index
    %99 = vector.load %arg3[%c200, %c0_52] : memref<368x40xf32, #tpu.memory_space<vmem>>, vector<64x32xf32>
    %cst_53 = arith.constant dense<0.000000e+00> : vector<1x32xf32>
    %100 = tpu.matmul %98, %99, %cst_53 {dimension_numbers = #tpu.dot_dimension_numbers<[1], [0], [0], [1], [0, 0, 1, 1], [], []>} : vector<1x64xf32>, vector<64x32xf32>, vector<1x32xf32> -> vector<1x32xf32>
    %c356 = arith.constant 356 : index
    %c0_54 = arith.constant 0 : index
    %101 = vector.load %arg3[%c356, %c0_54] : memref<368x40xf32, #tpu.memory_space<vmem>>, vector<1x32xf32>
    %102 = arith.addf %100, %101 : vector<1x32xf32>
    %cst_55 = arith.constant 0.000000e+00 : f32
    %103 = vector.broadcast %cst_55 : f32 to vector<1x32xf32>
    %104 = arith.maximumf %102, %103 : vector<1x32xf32>
    %c264 = arith.constant 264 : index
    %c0_56 = arith.constant 0 : index
    %105 = vector.load %arg3[%c264, %c0_56] : memref<368x40xf32, #tpu.memory_space<vmem>>, vector<32x8xf32>
    %cst_57 = arith.constant dense<0.000000e+00> : vector<1x8xf32>
    %106 = tpu.matmul %104, %105, %cst_57 {dimension_numbers = #tpu.dot_dimension_numbers<[1], [0], [0], [1], [0, 0, 1, 1], [], []>} : vector<1x32xf32>, vector<32x8xf32>, vector<1x8xf32> -> vector<1x8xf32>
    %c357 = arith.constant 357 : index
    %c0_58 = arith.constant 0 : index
    %107 = vector.load %arg3[%c357, %c0_58] : memref<368x40xf32, #tpu.memory_space<vmem>>, vector<1x8xf32>
    %108 = arith.addf %106, %107 : vector<1x8xf32>
    %109 = arith.subf %108, %0 : vector<1x8xf32>
    %c296 = arith.constant 296 : index
    %c0_59 = arith.constant 0 : index
    %110 = vector.load %arg3[%c296, %c0_59] : memref<368x40xf32, #tpu.memory_space<vmem>>, vector<8x24xf32>
    %cst_60 = arith.constant dense<0.000000e+00> : vector<1x24xf32>
    %111 = tpu.matmul %109, %110, %cst_60 {dimension_numbers = #tpu.dot_dimension_numbers<[1], [0], [0], [1], [0, 0, 1, 1], [], []>} : vector<1x8xf32>, vector<8x24xf32>, vector<1x24xf32> -> vector<1x24xf32>
    %c358 = arith.constant 358 : index
    %c0_61 = arith.constant 0 : index
    %112 = vector.load %arg3[%c358, %c0_61] : memref<368x40xf32, #tpu.memory_space<vmem>>, vector<1x24xf32>
    %113 = arith.addf %111, %112 : vector<1x24xf32>
    %cst_62 = arith.constant 0.000000e+00 : f32
    %114 = vector.broadcast %cst_62 : f32 to vector<1x24xf32>
    %115 = arith.maximumf %113, %114 : vector<1x24xf32>
    %c304 = arith.constant 304 : index
    %c0_63 = arith.constant 0 : index
    %116 = vector.load %arg3[%c304, %c0_63] : memref<368x40xf32, #tpu.memory_space<vmem>>, vector<24x8xf32>
    %cst_64 = arith.constant dense<0.000000e+00> : vector<1x8xf32>
    %117 = tpu.matmul %115, %116, %cst_64 {dimension_numbers = #tpu.dot_dimension_numbers<[1], [0], [0], [1], [0, 0, 1, 1], [], []>} : vector<1x24xf32>, vector<24x8xf32>, vector<1x8xf32> -> vector<1x8xf32>
    %c359 = arith.constant 359 : index
    %c0_65 = arith.constant 0 : index
    %118 = vector.load %arg3[%c359, %c0_65] : memref<368x40xf32, #tpu.memory_space<vmem>>, vector<1x8xf32>
    %119 = arith.addf %117, %118 : vector<1x8xf32>
    %cst_66 = arith.constant 0.000000e+00 : f32
    %120 = vector.broadcast %cst_66 : f32 to vector<1x8xf32>
    %121 = arith.maximumf %119, %120 : vector<1x8xf32>
    %122 = arith.addf %121, %0 : vector<1x8xf32>
    %c328 = arith.constant 328 : index
    %c0_67 = arith.constant 0 : index
    %123 = vector.load %arg3[%c328, %c0_67] : memref<368x40xf32, #tpu.memory_space<vmem>>, vector<8x16xf32>
    %cst_68 = arith.constant dense<0.000000e+00> : vector<1x16xf32>
    %124 = tpu.matmul %122, %123, %cst_68 {dimension_numbers = #tpu.dot_dimension_numbers<[1], [0], [0], [1], [0, 0, 1, 1], [], []>} : vector<1x8xf32>, vector<8x16xf32>, vector<1x16xf32> -> vector<1x16xf32>
    %c360 = arith.constant 360 : index
    %c0_69 = arith.constant 0 : index
    %125 = vector.load %arg3[%c360, %c0_69] : memref<368x40xf32, #tpu.memory_space<vmem>>, vector<1x16xf32>
    %126 = arith.addf %124, %125 : vector<1x16xf32>
    %cst_70 = arith.constant 0.000000e+00 : f32
    %127 = vector.broadcast %cst_70 : f32 to vector<1x16xf32>
    %128 = arith.maximumf %126, %127 : vector<1x16xf32>
    %c336 = arith.constant 336 : index
    %c0_71 = arith.constant 0 : index
    %129 = vector.load %arg3[%c336, %c0_71] : memref<368x40xf32, #tpu.memory_space<vmem>>, vector<16x8xf32>
    %cst_72 = arith.constant dense<0.000000e+00> : vector<1x8xf32>
    %130 = tpu.matmul %128, %129, %cst_72 {dimension_numbers = #tpu.dot_dimension_numbers<[1], [0], [0], [1], [0, 0, 1, 1], [], []>} : vector<1x16xf32>, vector<16x8xf32>, vector<1x8xf32> -> vector<1x8xf32>
    %c361 = arith.constant 361 : index
    %c0_73 = arith.constant 0 : index
    %131 = vector.load %arg3[%c361, %c0_73] : memref<368x40xf32, #tpu.memory_space<vmem>>, vector<1x8xf32>
    %132 = arith.addf %130, %131 : vector<1x8xf32>
    %cst_74 = arith.constant dense<0xFF800000> : vector<1xf32>
    %133 = vector.multi_reduction <maximumf>, %132, %cst_74 [1] : vector<1x8xf32> to vector<1xf32>
    %134 = vector.shape_cast %133 : vector<1xf32> to vector<1x1xf32>
    %135 = vector.broadcast %134 : vector<1x1xf32> to vector<1x8xf32>
    %136 = arith.subf %132, %135 : vector<1x8xf32>
    %137 = math.exp %136 : vector<1x8xf32>
    %cst_75 = arith.constant dense<0.000000e+00> : vector<1xf32>
    %138 = vector.multi_reduction <add>, %137, %cst_75 [1] : vector<1x8xf32> to vector<1xf32>
    %139 = vector.shape_cast %138 : vector<1xf32> to vector<1x1xf32>
    %140 = tpu.reciprocal %139 {approx = true} : vector<1x1xf32> -> vector<1x1xf32>
    %141 = arith.mulf %139, %140 : vector<1x1xf32>
    %cst_76 = arith.constant 2.000000e+00 : f32
    %142 = vector.broadcast %cst_76 : f32 to vector<1x1xf32>
    %143 = arith.subf %142, %141 : vector<1x1xf32>
    %144 = arith.mulf %140, %143 : vector<1x1xf32>
    %145 = vector.broadcast %144 : vector<1x1xf32> to vector<1x8xf32>
    %146 = arith.mulf %137, %145 : vector<1x8xf32>
    %c0_77 = arith.constant 0 : index
    %c0_78 = arith.constant 0 : index
    %147 = vector.load %arg5[%c0_77, %c0_78] : memref<1x8xf32, #tpu.memory_space<vmem>>, vector<1x8xf32>
    tpu.vector_store %arg5[%c0_77, %c0_78], %146 {strides = array<i32>} : memref<1x8xf32, #tpu.memory_space<vmem>>, vector<1x8xf32>,
    return
  }
}

</mosaic_0001>

<llo_original>
// kernel: forward.1
$region0: #{forward.1}
  #allocation0 [shape = 'u32[]', space=smem, size = 0x4, offset = 0x4, fixed_abs, tag = 'smem constant byte address 0x4 - core index']
  #allocation1 [shape = 'u32[144,128]{1,0:T(1,128)}', space=vmem, size = 0x12000, scoped, tag = 'internal scratch']
  #allocation2 [shape = 'f32[3,8]{1,0:T(4,128)}', space=vmem, size = 0x800, scoped, tag = 'scratch operand']
  %s0 = inlined_call_operand.vmem [shape: f32[8,8], index: 0, kind: input, shape index: {}]
  %s1 = inlined_call_operand.vmem [shape: f32[1,8], index: 1, kind: input, shape index: {}]
  %s2 = inlined_call_operand.vmem [shape: f32[1,6], index: 2, kind: input, shape index: {}]
  %s3 = inlined_call_operand.hbm [shape: f32[368,40], index: 3, kind: input, shape index: {}]
  %s4 = inlined_call_operand.hbm [shape: f32[33,192], index: 4, kind: input, shape index: {}]
  %s5 = inlined_call_operand.hbm [shape: f32[1,8], index: 5, kind: output, shape index: {}]
  %s6 = sld [smem:[#allocation0]]
  $region38: #{forward.1} parent=0
    _
  %s8 = ssub.s32 1, %s6
  %s9 = scalar_select 0, %s8, %s6
  $region1: #{forward.1} parent=0
    #allocation3 [shape = 'u8[188416]{0}', space=vmem, size = 0x2e000, scoped, tag = 'input window, operand 3, single buffered']
    #allocation4 [shape = 's32[1]{0}', space=sflag, size = 0x4, scoped, tag = 'scoped memory for forward.1']
    #allocation5 [shape = 's32[1]{0}', space=sflag, size = 0x4, scoped, tag = 'scoped memory for forward.1']
    #allocation6 [shape = 'u8[40960]{0}', space=vmem, size = 0xa000, scoped, tag = 'input window, operand 4, single buffered']
    #allocation7 [shape = 's32[1]{0}', space=sflag, size = 0x4, scoped, tag = 'scoped memory for forward.1']
    #allocation8 [shape = 'u8[512]{0}', space=vmem, size = 0x400, scoped, tag = 'output window, operand 0, single buffered']
    %10 = vsyncpa [#allocation4], 0
    %11 = vsyncpa [#allocation7], 0
    %12 = vsyncpa [#allocation5], 0
    // Predicated region
    $region2: #{forward.1} parent=1 // pred_check
      _
    $region3: #{forward.1} parent=1 // pred_check_branch
      %14 = sbr.rel (0) target = $region5
    $region4: #{forward.1} parent=1 // pred_region
      _
    $region5: #{forward.1} parent=1 // pred_fallthru
      _
    // Predicated region
    $region6: #{forward.1} parent=1 // pred_check
      _
    $region7: #{forward.1} parent=1 // pred_check_branch
      %16 = sbr.rel (0) target = $region9
    $region8: #{forward.1} parent=1 // pred_region
      _
    $region9: #{forward.1} parent=1 // pred_fallthru
      _
    // Predicated region
    $region10: #{forward.1} parent=1 // pred_check
      _
    $region11: #{forward.1} parent=1 // pred_check_branch
      %18 = sbr.rel (0) target = $region13
    $region12: #{forward.1} parent=1 // pred_region
      _
    $region13: #{forward.1} parent=1 // pred_fallthru
      _
    // Predicated region
    $region14: #{forward.1} parent=1 // pred_check
      _
    $region15: #{forward.1} parent=1 // pred_check_branch
      %20 = sbr.rel (0) target = $region17
    $region16: #{forward.1} parent=1 // pred_region
      %s22 = ssub.s32 5888, 5888
      %23 = vsyncadd [#allocation4], %s22
      %s24 = sshll.u32 [#allocation3], 4
      %s25 = int_to_ptr.vmem [resolvable:$true] %s24
      %30 = dma.hbm_to_vmem [thread:$0]  %s3, 5888, %s25, [#allocation4], 128, 128, 8
    $region17: #{forward.1} parent=1 // pred_fallthru
      _
    // Predicated region
    $region18: #{forward.1} parent=1 // pred_check
      _
    $region19: #{forward.1} parent=1 // pred_check_branch
      %32 = sbr.rel (0) target = $region21
    $region20: #{forward.1} parent=1 // pred_region
      %s34 = ssub.s32 1280, 1280
      %35 = vsyncadd [#allocation7], %s34
      %s36 = sshll.u32 [#allocation6], 4
      %s37 = int_to_ptr.vmem [resolvable:$true] %s36
      %42 = dma.hbm_to_vmem [thread:$0]  %s4, 1280, %s37, [#allocation7], 256, 256, 16
    $region21: #{forward.1} parent=1 // pred_fallthru
      _
    // Predicated region
    $region22: #{forward.1} parent=1 // pred_check
      _
    $region23: #{forward.1} parent=1 // pred_check_branch
      %44 = sbr.rel (0) target = $region25
    $region24: #{forward.1} parent=1 // pred_region
      %45 = dma.done [#allocation4], 5888
    $region25: #{forward.1} parent=1 // pred_fallthru
      _
    // Predicated region
    $region26: #{forward.1} parent=1 // pred_check
      _
    $region27: #{forward.1} parent=1 // pred_check_branch
      %47 = sbr.rel (0) target = $region29
    $region28: #{forward.1} parent=1 // pred_region
      %48 = dma.done [#allocation7], 1280
    $region29: #{forward.1} parent=1 // pred_fallthru
      _
    %v49 = vld [vmem:[%s1] sm:$0x1]
    %v50 = vld [vmem:[#allocation3] sm:$0xff]
    %v51 = vld [vmem:[#allocation3 + $0x8] sm:$0xff]
    %v52 = vld [vmem:[#allocation3 + $0x10] sm:$0xff]
    %v53 = vld [vmem:[#allocation3 + $0x18] sm:$0xff]
    %v54 = vld [vmem:[#allocation3 + $0x20] sm:$0xff]
    %v55 = vld [vmem:[%s0] sm:$0xff]
    %v56 = vld [vmem:[#allocation3 + $0x28] sm:$0xff]
    %v57 = vld [vmem:[#allocation3 + $0x30] sm:$0xff]
    %v58 = vld [vmem:[#allocation3 + $0x38] sm:$0xff]
    %v59 = vld [vmem:[#allocation3 + $0x40] sm:$0xff]
    %v60 = vld [vmem:[#allocation3 + $0x48] sm:$0xff]
    %62 = vset.pattern.permute.xlu0 0
    %63 = vperm.xlu0 %62, %v56
    %v64 = vpop.permute.xlu0 %63
    %67 = vset.pattern.permute.xlu0 0
    %68 = vperm.xlu0 %67, %v57
    %v69 = vpop.permute.xlu0 %68
    %72 = vset.pattern.permute.xlu0 0
    %73 = vperm.xlu0 %72, %v58
    %v74 = vpop.permute.xlu0 %73
    %77 = vset.pattern.permute.xlu0 0
    %78 = vperm.xlu0 %77, %v59
    %v79 = vpop.permute.xlu0 %78
    %82 = vset.pattern.permute.xlu0 0
    %83 = vperm.xlu0 %82, %v60
    %v84 = vpop.permute.xlu0 %83
    %vm86 = vcmask 64512
    %v88 = vsel %vm86, %v50, 0
    %v91 = vsel %vm86, %v51, 0
    %v94 = vsel %vm86, %v52, 0
    %v97 = vsel %vm86, %v53, 0
    %v100 = vsel %vm86, %v54, 0
    %102 = vmatprep.subr.mxu0 0.0
    %103 = vmatpush1.msra.mxu0 %v55
    %104 = vmatprep.subr.mxu0 0.0
    %105 = vmatpush1.msra.mxu0 0.0
    %106 = vmatprep.subr.mxu0 0.0
    %107 = vmatpush1.msra.mxu0 0.0
    %108 = vmatprep.subr.mxu0 0.0
    %109 = vmatpush1.msra.mxu0 0.0
    %110 = vmatprep.subr.mxu0 0.0
    %111 = vmatpush1.msra.mxu0 0.0
    %112 = vmatprep.subr.mxu0 0.0
    %113 = vmatpush1.msra.mxu0 0.0
    %114 = vmatprep.subr.mxu0 0.0
    %115 = vmatpush1.msra.mxu0 0.0
    %116 = vmatprep.subr.mxu0 0.0
    %117 = vmatpush1.msra.mxu0 0.0
    %118 = vmatprep.subr.mxu0 0.0
    %119 = vmatpush1.msra.mxu0 0.0
    %120 = vmatprep.subr.mxu0 0.0
    %121 = vmatpush1.msra.mxu0 0.0
    %122 = vmatprep.subr.mxu0 0.0
    %123 = vmatpush1.msra.mxu0 0.0
    %124 = vmatprep.subr.mxu0 0.0
    %125 = vmatpush1.msra.mxu0 0.0
    %126 = vmatprep.subr.mxu0 0.0
    %127 = vmatpush1.msra.mxu0 0.0
    %128 = vmatprep.subr.mxu0 0.0
    %129 = vmatpush1.msra.mxu0 0.0
    %130 = vmatprep.subr.mxu0 0.0
    %131 = vmatpush1.msra.mxu0 0.0
    %132 = vmatprep.subr.mxu0 0.0
    %133 = vmatpush1.msra.mxu0 0.0
    %134 = vmatprep.subr.mxu0 0.0
    %135 = vmatpush1.msra.mxu0 0.0
    %136 = vmatprep.subr.mxu0 0.0
    %137 = vmatpush1.msra.mxu0 0.0
    %138 = vmatprep.subr.mxu0 0.0
    %139 = vmatpush1.msra.mxu0 0.0
    %140 = vmatprep.subr.mxu0 0.0
    %141 = vmatpush1.msra.mxu0 0.0
    %142 = vmatprep.subr.mxu0 0.0
    %143 = vmatpush1.msra.mxu0 0.0
    %144 = vmatprep.subr.mxu0 0.0
    %145 = vmatpush1.msra.mxu0 0.0
    %146 = vmatprep.subr.mxu0 0.0
    %147 = vmatpush1.msra.mxu0 0.0
    %148 = vmatprep.subr.mxu0 0.0
    %149 = vmatpush1.msra.mxu0 0.0
    %150 = vmatprep.subr.mxu0 0.0
    %151 = vmatpush1.msra.mxu0 0.0
    %152 = vmatprep.subr.mxu0 0.0
    %153 = vmatpush1.msra.mxu0 0.0
    %154 = vmatprep.subr.mxu0 0.0
    %155 = vmatpush1.msra.mxu0 0.0
    %156 = vmatprep.subr.mxu0 0.0
    %157 = vmatpush1.msra.mxu0 0.0
    %158 = vmatprep.subr.mxu0 0.0
    %159 = vmatpush1.msra.mxu0 0.0
    %160 = vmatprep.subr.mxu0 0.0
    %161 = vmatpush1.msra.mxu0 0.0
    %162 = vmatprep.subr.mxu0 0.0
    %163 = vmatpush1.msra.mxu0 0.0
    %164 = vmatprep.subr.mxu0 0.0
    %165 = vmatpush1.msra.mxu0 0.0
    %166 = vmatprep.mubr.f32.mxu0 0.0
    %167 = vmatmul.mubr.f32.gmra.mrb[0].mxu0 %v88
    %v168 = vpop.f32.mrb[0].mxu0
    %v169 = vadd.f32 %v64, %v168
    %v170 = vpop.f32.mrb[0].mxu0
    %171 = vmatprep.mubr.f32.mxu0 0.0
    %172 = vmatmul.mubr.f32.gmra.mrb[0].mxu0 %v91
    %v173 = vpop.f32.mrb[0].mxu0
    %v174 = vadd.f32 %v69, %v173
    %v175 = vpop.f32.mrb[0].mxu0
    %176 = vmatprep.mubr.f32.mxu0 0.0
    %177 = vmatmul.mubr.f32.gmra.mrb[0].mxu0 %v94
    %v178 = vpop.f32.mrb[0].mxu0
    %v179 = vadd.f32 %v74, %v178
    %v180 = vpop.f32.mrb[0].mxu0
    %181 = vmatprep.mubr.f32.mxu0 0.0
    %182 = vmatmul.mubr.f32.gmra.mrb[0].mxu0 %v97
    %v183 = vpop.f32.mrb[0].mxu0
    %v184 = vadd.f32 %v79, %v183
    %v185 = vpop.f32.mrb[0].mxu0
    %186 = vmatprep.mubr.f32.mxu0 0.0
    %187 = vmatmul.mubr.f32.gmra.mrb[0].mxu0 %v100
    %v188 = vpop.f32.mrb[0].mxu0
    %v189 = vadd.f32 %v84, %v188
    %v190 = vpop.f32.mrb[0].mxu0
    %191 = vdwg.mxu0
    %v192 = vld [vmem:[#allocation3 + $0x50] sm:$0x7]
    %vm193 = vcmask 326656
    %v195 = vsel %vm193, %v192, 0
    %197 = vmatprep.subr.mxu0 0.0
    %198 = vmatpush1.msra.mxu0 %v169
    %199 = vmatprep.subr.mxu0 0.0
    %200 = vmatpush1.msra.mxu0 %v174
    %201 = vmatprep.subr.mxu0 0.0
    %202 = vmatpush1.msra.mxu0 %v179
    %203 = vmatprep.subr.mxu0 0.0
    %204 = vmatpush1.msra.mxu0 %v184
    %205 = vmatprep.subr.mxu0 0.0
    %206 = vmatpush1.msra.mxu0 %v189
    %207 = vmatprep.subr.mxu0 0.0
    %208 = vmatpush1.msra.mxu0 0.0
    %209 = vmatprep.subr.mxu0 0.0
    %210 = vmatpush1.msra.mxu0 0.0
    %211 = vmatprep.subr.mxu0 0.0
    %212 = vmatpush1.msra.mxu0 0.0
    %213 = vmatprep.subr.mxu0 0.0
    %214 = vmatpush1.msra.mxu0 0.0
    %215 = vmatprep.subr.mxu0 0.0
    %216 = vmatpush1.msra.mxu0 0.0
    %217 = vmatprep.subr.mxu0 0.0
    %218 = vmatpush1.msra.mxu0 0.0
    %219 = vmatprep.subr.mxu0 0.0
    %220 = vmatpush1.msra.mxu0 0.0
    %221 = vmatprep.subr.mxu0 0.0
    %222 = vmatpush1.msra.mxu0 0.0
    %223 = vmatprep.subr.mxu0 0.0
    %224 = vmatpush1.msra.mxu0 0.0
    %225 = vmatprep.subr.mxu0 0.0
    %226 = vmatpush1.msra.mxu0 0.0
    %227 = vmatprep.subr.mxu0 0.0
    %228 = vmatpush1.msra.mxu0 0.0
    %229 = vmatprep.subr.mxu0 0.0
    %230 = vmatpush1.msra.mxu0 0.0
    %231 = vmatprep.subr.mxu0 0.0
    %232 = vmatpush1.msra.mxu0 0.0
    %233 = vmatprep.subr.mxu0 0.0
    %234 = vmatpush1.msra.mxu0 0.0
    %235 = vmatprep.subr.mxu0 0.0
    %236 = vmatpush1.msra.mxu0 0.0
    %237 = vmatprep.subr.mxu0 0.0
    %238 = vmatpush1.msra.mxu0 0.0
    %239 = vmatprep.subr.mxu0 0.0
    %240 = vmatpush1.msra.mxu0 0.0
    %241 = vmatprep.subr.mxu0 0.0
    %242 = vmatpush1.msra.mxu0 0.0
    %243 = vmatprep.subr.mxu0 0.0
    %244 = vmatpush1.msra.mxu0 0.0
    %245 = vmatprep.subr.mxu0 0.0
    %246 = vmatpush1.msra.mxu0 0.0
    %247 = vmatprep.subr.mxu0 0.0
    %248 = vmatpush1.msra.mxu0 0.0
    %249 = vmatprep.subr.mxu0 0.0
    %250 = vmatpush1.msra.mxu0 0.0
    %251 = vmatprep.subr.mxu0 0.0
    %252 = vmatpush1.msra.mxu0 0.0
    %253 = vmatprep.subr.mxu0 0.0
    %254 = vmatpush1.msra.mxu0 0.0
    %255 = vmatprep.subr.mxu0 0.0
    %256 = vmatpush1.msra.mxu0 0.0
    %257 = vmatprep.subr.mxu0 0.0
    %258 = vmatpush1.msra.mxu0 0.0
    %259 = vmatprep.subr.mxu0 0.0
    %260 = vmatpush1.msra.mxu0 0.0
    %261 = vmatprep.mubr.f32.mxu0 0.0
    %262 = vmatmul.mubr.f32.gmra.mrb[0].mxu0 %v195
    %v263 = vpop.f32.mrb[0].mxu0
    %v264 = vadd.f32 0.0, %v263
    %v265 = vpop.f32.mrb[0].mxu0
    %266 = vdwg.mxu0
    %vm267 = vcmask 59392
    %268 = vst.msk [vmem:[#allocation2] sm:$0x7] %vm267, %v264
    %v269 = vld [vmem:[#allocation2] sm:$0x1]
    %v270 = vld [vmem:[#allocation2 + $0x1] sm:$0x1]
    %v271 = vld [vmem:[#allocation2 + $0x2] sm:$0x1]
    %v272 = vlaneseq
    %v273 = vshrl.u32 %v272, 7
    %v274 = vlaneseq
    %v275 = vand.u32 %v274, 127
    %v276 = vadd.s32 %v273, 1
    %vm277 = vcmp.eq.s32.totalorder %v276, %v275
    %v278 = vsel %vm277, 1, 0
    %v279 = vcvt.s32.f32 %v278
    %v280 = vsub.s32 %v273, 1
    %vm281 = vcmp.eq.s32.totalorder %v280, %v275
    %v282 = vsel %vm281, 1, 0
    %v283 = vcvt.s32.f32 %v282
    %v284 = vld [vmem:[#allocation3 + $0x160] sm:$0x1]
    %v286 = vsel %vm86, %v269, 0
    %288 = vmatprep.subr.mxu0 0.0
    %289 = vmatpush1.msra.mxu0 %v279
    %290 = vmatprep.subr.mxu0 0.0
    %291 = vmatpush1.msra.mxu0 0.0
    %292 = vmatprep.subr.mxu0 0.0
    %293 = vmatpush1.msra.mxu0 0.0
    %294 = vmatprep.subr.mxu0 0.0
    %295 = vmatpush1.msra.mxu0 0.0
    %296 = vmatprep.subr.mxu0 0.0
    %297 = vmatpush1.msra.mxu0 0.0
    %298 = vmatprep.subr.mxu0 0.0
    %299 = vmatpush1.msra.mxu0 0.0
    %300 = vmatprep.subr.mxu0 0.0
    %301 = vmatpush1.msra.mxu0 0.0
    %302 = vmatprep.subr.mxu0 0.0
    %303 = vmatpush1.msra.mxu0 0.0
    %304 = vmatprep.subr.mxu0 0.0
    %305 = vmatpush1.msra.mxu0 0.0
    %306 = vmatprep.subr.mxu0 0.0
    %307 = vmatpush1.msra.mxu0 0.0
    %308 = vmatprep.subr.mxu0 0.0
    %309 = vmatpush1.msra.mxu0 0.0
    %310 = vmatprep.subr.mxu0 0.0
    %311 = vmatpush1.msra.mxu0 0.0
    %312 = vmatprep.subr.mxu0 0.0
    %313 = vmatpush1.msra.mxu0 0.0
    %314 = vmatprep.subr.mxu0 0.0
    %315 = vmatpush1.msra.mxu0 0.0
    %316 = vmatprep.subr.mxu0 0.0
    %317 = vmatpush1.msra.mxu0 0.0
    %318 = vmatprep.subr.mxu0 0.0
    %319 = vmatpush1.msra.mxu0 0.0
    %320 = vmatprep.subr.mxu0 0.0
    %321 = vmatpush1.msra.mxu0 0.0
    %322 = vmatprep.subr.mxu0 0.0
    %323 = vmatpush1.msra.mxu0 0.0
    %324 = vmatprep.subr.mxu0 0.0
    %325 = vmatpush1.msra.mxu0 0.0
    %326 = vmatprep.subr.mxu0 0.0
    %327 = vmatpush1.msra.mxu0 0.0
    %328 = vmatprep.subr.mxu0 0.0
    %329 = vmatpush1.msra.mxu0 0.0
    %330 = vmatprep.subr.mxu0 0.0
    %331 = vmatpush1.msra.mxu0 0.0
    %332 = vmatprep.subr.mxu0 0.0
    %333 = vmatpush1.msra.mxu0 0.0
    %334 = vmatprep.subr.mxu0 0.0
    %335 = vmatpush1.msra.mxu0 0.0
    %336 = vmatprep.subr.mxu0 0.0
    %337 = vmatpush1.msra.mxu0 0.0
    %338 = vmatprep.subr.mxu0 0.0
    %339 = vmatpush1.msra.mxu0 0.0
    %340 = vmatprep.subr.mxu0 0.0
    %341 = vmatpush1.msra.mxu0 0.0
    %342 = vmatprep.subr.mxu0 0.0
    %343 = vmatpush1.msra.mxu0 0.0
    %344 = vmatprep.subr.mxu0 0.0
    %345 = vmatpush1.msra.mxu0 0.0
    %346 = vmatprep.subr.mxu0 0.0
    %347 = vmatpush1.msra.mxu0 0.0
    %348 = vmatprep.subr.mxu0 0.0
    %349 = vmatpush1.msra.mxu0 0.0
    %350 = vmatprep.subr.mxu0 0.0
    %351 = vmatpush1.msra.mxu0 0.0
    %352 = vmatprep.mubr.f32.mxu0 0.0
    %353 = vmatmul.mubr.f32.gmra.mrb[0].mxu0 %v286
    %v354 = vpop.f32.mrb[0].mxu0
    %v355 = vadd.f32 0.0, %v354
    %v356 = vpop.f32.mrb[0].mxu0
    %357 = vdwg.mxu0
    %359 = vset.pattern.permute.xlu0 0
    %360 = vperm.xlu0 %359, %v284
    %v361 = vpop.permute.xlu0 %360
    %v363 = vadd.f32 %v361, %v355
    %v364 = vadd.f32 %v363, %v270
    %v366 = vsel %vm86, %v271, 0
    %368 = vmatprep.subr.mxu0 0.0
    %369 = vmatpush1.msra.mxu0 %v283
    %370 = vmatprep.subr.mxu0 0.0
    %371 = vmatpush1.msra.mxu0 0.0
    %372 = vmatprep.subr.mxu0 0.0
    %373 = vmatpush1.msra.mxu0 0.0
    %374 = vmatprep.subr.mxu0 0.0
    %375 = vmatpush1.msra.mxu0 0.0
    %376 = vmatprep.subr.mxu0 0.0
    %377 = vmatpush1.msra.mxu0 0.0
    %378 = vmatprep.subr.mxu0 0.0
    %379 = vmatpush1.msra.mxu0 0.0
    %380 = vmatprep.subr.mxu0 0.0
    %381 = vmatpush1.msra.mxu0 0.0
    %382 = vmatprep.subr.mxu0 0.0
    %383 = vmatpush1.msra.mxu0 0.0
    %384 = vmatprep.subr.mxu0 0.0
    %385 = vmatpush1.msra.mxu0 0.0
    %386 = vmatprep.subr.mxu0 0.0
    %387 = vmatpush1.msra.mxu0 0.0
    %388 = vmatprep.subr.mxu0 0.0
    %389 = vmatpush1.msra.mxu0 0.0
    %390 = vmatprep.subr.mxu0 0.0
    %391 = vmatpush1.msra.mxu0 0.0
    %392 = vmatprep.subr.mxu0 0.0
    %393 = vmatpush1.msra.mxu0 0.0
    %394 = vmatprep.subr.mxu0 0.0
    %395 = vmatpush1.msra.mxu0 0.0
    %396 = vmatprep.subr.mxu0 0.0
    %397 = vmatpush1.msra.mxu0 0.0
    %398 = vmatprep.subr.mxu0 0.0
    %399 = vmatpush1.msra.mxu0 0.0
    %400 = vmatprep.subr.mxu0 0.0
    %401 = vmatpush1.msra.mxu0 0.0
    %402 = vmatprep.subr.mxu0 0.0
    %403 = vmatpush1.msra.mxu0 0.0
    %404 = vmatprep.subr.mxu0 0.0
    %405 = vmatpush1.msra.mxu0 0.0
    %406 = vmatprep.subr.mxu0 0.0
    %407 = vmatpush1.msra.mxu0 0.0
    %408 = vmatprep.subr.mxu0 0.0
    %409 = vmatpush1.msra.mxu0 0.0
    %410 = vmatprep.subr.mxu0 0.0
    %411 = vmatpush1.msra.mxu0 0.0
    %412 = vmatprep.subr.mxu0 0.0
    %413 = vmatpush1.msra.mxu0 0.0
    %414 = vmatprep.subr.mxu0 0.0
    %415 = vmatpush1.msra.mxu0 0.0
    %416 = vmatprep.subr.mxu0 0.0
    %417 = vmatpush1.msra.mxu0 0.0
    %418 = vmatprep.subr.mxu0 0.0
    %419 = vmatpush1.msra.mxu0 0.0
    %420 = vmatprep.subr.mxu0 0.0
    %421 = vmatpush1.msra.mxu0 0.0
    %422 = vmatprep.subr.mxu0 0.0
    %423 = vmatpush1.msra.mxu0 0.0
    %424 = vmatprep.subr.mxu0 0.0
    %425 = vmatpush1.msra.mxu0 0.0
    %426 = vmatprep.subr.mxu0 0.0
    %427 = vmatpush1.msra.mxu0 0.0
    %428 = vmatprep.subr.mxu0 0.0
    %429 = vmatpush1.msra.mxu0 0.0
    %430 = vmatprep.subr.mxu0 0.0
    %431 = vmatpush1.msra.mxu0 0.0
    %432 = vmatprep.mubr.f32.mxu0 0.0
    %433 = vmatmul.mubr.f32.gmra.mrb[0].mxu0 %v366
    %v434 = vpop.f32.mrb[0].mxu0
    %v435 = vadd.f32 0.0, %v434
    %v436 = vpop.f32.mrb[0].mxu0
    %437 = vdwg.mxu0
    %v438 = vadd.f32 %v364, %v435
    %vm439 = vcmp.eq.s32.totalorder %v275, 0
    %v441 = vsel %vm86, %v438, 0
    %443 = vmatprep.subr.mxu0 0.0
    %444 = vmatpush1.msra.mxu0 %v279
    %445 = vmatprep.subr.mxu0 0.0
    %446 = vmatpush1.msra.mxu0 0.0
    %447 = vmatprep.subr.mxu0 0.0
    %448 = vmatpush1.msra.mxu0 0.0
    %449 = vmatprep.subr.mxu0 0.0
    %450 = vmatpush1.msra.mxu0 0.0
    %451 = vmatprep.subr.mxu0 0.0
    %452 = vmatpush1.msra.mxu0 0.0
    %453 = vmatprep.subr.mxu0 0.0
    %454 = vmatpush1.msra.mxu0 0.0
    %455 = vmatprep.subr.mxu0 0.0
    %456 = vmatpush1.msra.mxu0 0.0
    %457 = vmatprep.subr.mxu0 0.0
    %458 = vmatpush1.msra.mxu0 0.0
    %459 = vmatprep.subr.mxu0 0.0
    %460 = vmatpush1.msra.mxu0 0.0
    %461 = vmatprep.subr.mxu0 0.0
    %462 = vmatpush1.msra.mxu0 0.0
    %463 = vmatprep.subr.mxu0 0.0
    %464 = vmatpush1.msra.mxu0 0.0
    %465 = vmatprep.subr.mxu0 0.0
    %466 = vmatpush1.msra.mxu0 0.0
    %467 = vmatprep.subr.mxu0 0.0
    %468 = vmatpush1.msra.mxu0 0.0
    %469 = vmatprep.subr.mxu0 0.0
    %470 = vmatpush1.msra.mxu0 0.0
    %471 = vmatprep.subr.mxu0 0.0
    %472 = vmatpush1.msra.mxu0 0.0
    %473 = vmatprep.subr.mxu0 0.0
    %474 = vmatpush1.msra.mxu0 0.0
    %475 = vmatprep.subr.mxu0 0.0
    %476 = vmatpush1.msra.mxu0 0.0
    %477 = vmatprep.subr.mxu0 0.0
    %478 = vmatpush1.msra.mxu0 0.0
    %479 = vmatprep.subr.mxu0 0.0
    %480 = vmatpush1.msra.mxu0 0.0
    %481 = vmatprep.subr.mxu0 0.0
    %482 = vmatpush1.msra.mxu0 0.0
    %483 = vmatprep.subr.mxu0 0.0
    %484 = vmatpush1.msra.mxu0 0.0
    %485 = vmatprep.subr.mxu0 0.0
    %486 = vmatpush1.msra.mxu0 0.0
    %487 = vmatprep.subr.mxu0 0.0
    %488 = vmatpush1.msra.mxu0 0.0
    %489 = vmatprep.subr.mxu0 0.0
    %490 = vmatpush1.msra.mxu0 0.0
    %491 = vmatprep.subr.mxu0 0.0
    %492 = vmatpush1.msra.mxu0 0.0
    %493 = vmatprep.subr.mxu0 0.0
    %494 = vmatpush1.msra.mxu0 0.0
    %495 = vmatprep.subr.mxu0 0.0
    %496 = vmatpush1.msra.mxu0 0.0
    %497 = vmatprep.subr.mxu0 0.0
    %498 = vmatpush1.msra.mxu0 0.0
    %499 = vmatprep.subr.mxu0 0.0
    %500 = vmatpush1.msra.mxu0 0.0
    %501 = vmatprep.subr.mxu0 0.0
    %502 = vmatpush1.msra.mxu0 0.0
    %503 = vmatprep.subr.mxu0 0.0
    %504 = vmatpush1.msra.mxu0 0.0
    %505 = vmatprep.subr.mxu0 0.0
    %506 = vmatpush1.msra.mxu0 0.0
    %507 = vmatprep.mubr.f32.mxu0 0.0
    %508 = vmatmul.mubr.f32.gmra.mrb[0].mxu0 %v441
    %v509 = vpop.f32.mrb[0].mxu0
    %v510 = vadd.f32 0.0, %v509
    %v511 = vpop.f32.mrb[0].mxu0
    %512 = vdwg.mxu0
    %v513 = vsel %vm439, -1e+30, %v510
    %vm514 = vcmp.eq.s32.totalorder %v275, 7
    %515 = vmatprep.subr.mxu0 0.0
    %516 = vmatpush1.msra.mxu0 %v283
    %517 = vmatprep.subr.mxu0 0.0
    %518 = vmatpush1.msra.mxu0 0.0
    %519 = vmatprep.subr.mxu0 0.0
    %520 = vmatpush1.msra.mxu0 0.0
    %521 = vmatprep.subr.mxu0 0.0
    %522 = vmatpush1.msra.mxu0 0.0
    %523 = vmatprep.subr.mxu0 0.0
    %524 = vmatpush1.msra.mxu0 0.0
    %525 = vmatprep.subr.mxu0 0.0
    %526 = vmatpush1.msra.mxu0 0.0
    %527 = vmatprep.subr.mxu0 0.0
    %528 = vmatpush1.msra.mxu0 0.0
    %529 = vmatprep.subr.mxu0 0.0
    %530 = vmatpush1.msra.mxu0 0.0
    %531 = vmatprep.subr.mxu0 0.0
    %532 = vmatpush1.msra.mxu0 0.0
    %533 = vmatprep.subr.mxu0 0.0
    %534 = vmatpush1.msra.mxu0 0.0
    %535 = vmatprep.subr.mxu0 0.0
    %536 = vmatpush1.msra.mxu0 0.0
    %537 = vmatprep.subr.mxu0 0.0
    %538 = vmatpush1.msra.mxu0 0.0
    %539 = vmatprep.subr.mxu0 0.0
    %540 = vmatpush1.msra.mxu0 0.0
    %541 = vmatprep.subr.mxu0 0.0
    %542 = vmatpush1.msra.mxu0 0.0
    %543 = vmatprep.subr.mxu0 0.0
    %544 = vmatpush1.msra.mxu0 0.0
    %545 = vmatprep.subr.mxu0 0.0
    %546 = vmatpush1.msra.mxu0 0.0
    %547 = vmatprep.subr.mxu0 0.0
    %548 = vmatpush1.msra.mxu0 0.0
    %549 = vmatprep.subr.mxu0 0.0
    %550 = vmatpush1.msra.mxu0 0.0
    %551 = vmatprep.subr.mxu0 0.0
    %552 = vmatpush1.msra.mxu0 0.0
    %553 = vmatprep.subr.mxu0 0.0
    %554 = vmatpush1.msra.mxu0 0.0
    %555 = vmatprep.subr.mxu0 0.0
    %556 = vmatpush1.msra.mxu0 0.0
    %557 = vmatprep.subr.mxu0 0.0
    %558 = vmatpush1.msra.mxu0 0.0
    %559 = vmatprep.subr.mxu0 0.0
    %560 = vmatpush1.msra.mxu0 0.0
    %561 = vmatprep.subr.mxu0 0.0
    %562 = vmatpush1.msra.mxu0 0.0
    %563 = vmatprep.subr.mxu0 0.0
    %564 = vmatpush1.msra.mxu0 0.0
    %565 = vmatprep.subr.mxu0 0.0
    %566 = vmatpush1.msra.mxu0 0.0
    %567 = vmatprep.subr.mxu0 0.0
    %568 = vmatpush1.msra.mxu0 0.0
    %569 = vmatprep.subr.mxu0 0.0
    %570 = vmatpush1.msra.mxu0 0.0
    %571 = vmatprep.subr.mxu0 0.0
    %572 = vmatpush1.msra.mxu0 0.0
    %573 = vmatprep.subr.mxu0 0.0
    %574 = vmatpush1.msra.mxu0 0.0
    %575 = vmatprep.subr.mxu0 0.0
    %576 = vmatpush1.msra.mxu0 0.0
    %577 = vmatprep.subr.mxu0 0.0
    %578 = vmatpush1.msra.mxu0 0.0
    %579 = vmatprep.mubr.f32.mxu0 0.0
    %580 = vmatmul.mubr.f32.gmra.mrb[0].mxu0 %v441
    %v581 = vpop.f32.mrb[0].mxu0
    %v582 = vadd.f32 0.0, %v581
    %v583 = vpop.f32.mrb[0].mxu0
    %584 = vdwg.mxu0
    %v585 = vsel %vm514, -1e+30, %v582
    %v586 = vmax.f32 %v513, %v438
    %v587 = vmax.f32 %v586, %v585
    %v588 = vld [vmem:[#allocation3 + $0x58] sm:$0xff]
    %v589 = vld [vmem:[#allocation3 + $0x161] sm:$0x1]
    %v591 = vsel %vm86, %v587, 0
    %593 = vmatprep.subr.mxu0 0.0
    %594 = vmatpush1.msra.mxu0 %v588
    %595 = vmatprep.subr.mxu0 0.0
    %596 = vmatpush1.msra.mxu0 0.0
    %597 = vmatprep.subr.mxu0 0.0
    %598 = vmatpush1.msra.mxu0 0.0
    %599 = vmatprep.subr.mxu0 0.0
    %600 = vmatpush1.msra.mxu0 0.0
    %601 = vmatprep.subr.mxu0 0.0
    %602 = vmatpush1.msra.mxu0 0.0
    %603 = vmatprep.subr.mxu0 0.0
    %604 = vmatpush1.msra.mxu0 0.0
    %605 = vmatprep.subr.mxu0 0.0
    %606 = vmatpush1.msra.mxu0 0.0
    %607 = vmatprep.subr.mxu0 0.0
    %608 = vmatpush1.msra.mxu0 0.0
    %609 = vmatprep.subr.mxu0 0.0
    %610 = vmatpush1.msra.mxu0 0.0
    %611 = vmatprep.subr.mxu0 0.0
    %612 = vmatpush1.msra.mxu0 0.0
    %613 = vmatprep.subr.mxu0 0.0
    %614 = vmatpush1.msra.mxu0 0.0
    %615 = vmatprep.subr.mxu0 0.0
    %616 = vmatpush1.msra.mxu0 0.0
    %617 = vmatprep.subr.mxu0 0.0
    %618 = vmatpush1.msra.mxu0 0.0
    %619 = vmatprep.subr.mxu0 0.0
    %620 = vmatpush1.msra.mxu0 0.0
    %621 = vmatprep.subr.mxu0 0.0
    %622 = vmatpush1.msra.mxu0 0.0
    %623 = vmatprep.subr.mxu0 0.0
    %624 = vmatpush1.msra.mxu0 0.0
    %625 = vmatprep.subr.mxu0 0.0
    %626 = vmatpush1.msra.mxu0 0.0
    %627 = vmatprep.subr.mxu0 0.0
    %628 = vmatpush1.msra.mxu0 0.0
    %629 = vmatprep.subr.mxu0 0.0
    %630 = vmatpush1.msra.mxu0 0.0
    %631 = vmatprep.subr.mxu0 0.0
    %632 = vmatpush1.msra.mxu0 0.0
    %633 = vmatprep.subr.mxu0 0.0
    %634 = vmatpush1.msra.mxu0 0.0
    %635 = vmatprep.subr.mxu0 0.0
    %636 = vmatpush1.msra.mxu0 0.0
    %637 = vmatprep.subr.mxu0 0.0
    %638 = vmatpush1.msra.mxu0 0.0
    %639 = vmatprep.subr.mxu0 0.0
    %640 = vmatpush1.msra.mxu0 0.0
    %641 = vmatprep.subr.mxu0 0.0
    %642 = vmatpush1.msra.mxu0 0.0
    %643 = vmatprep.subr.mxu0 0.0
    %644 = vmatpush1.msra.mxu0 0.0
    %645 = vmatprep.subr.mxu0 0.0
    %646 = vmatpush1.msra.mxu0 0.0
    %647 = vmatprep.subr.mxu0 0.0
    %648 = vmatpush1.msra.mxu0 0.0
    %649 = vmatprep.subr.mxu0 0.0
    %650 = vmatpush1.msra.mxu0 0.0
    %651 = vmatprep.subr.mxu0 0.0
    %652 = vmatpush1.msra.mxu0 0.0
    %653 = vmatprep.subr.mxu0 0.0
    %654 = vmatpush1.msra.mxu0 0.0
    %655 = vmatprep.subr.mxu0 0.0
    %656 = vmatpush1.msra.mxu0 0.0
    %657 = vmatprep.mubr.f32.mxu0 0.0
    %658 = vmatmul.mubr.f32.gmra.mrb[0].mxu0 %v591
    %v659 = vpop.f32.mrb[0].mxu0
    %v660 = vadd.f32 %v589, %v659
    %v661 = vpop.f32.mrb[0].mxu0
    %662 = vdwg.mxu0
    %v663 = vmax.f32 %v660, 0.0
    %v665 = vsel %vm86, %v49, 0
    %667 = vmatprep.subr.mxu0 0.0
    %668 = vmatpush1.msra.mxu0 %v588
    %669 = vmatprep.subr.mxu0 0.0
    %670 = vmatpush1.msra.mxu0 0.0
    %671 = vmatprep.subr.mxu0 0.0
    %672 = vmatpush1.msra.mxu0 0.0
    %673 = vmatprep.subr.mxu0 0.0
    %674 = vmatpush1.msra.mxu0 0.0
    %675 = vmatprep.subr.mxu0 0.0
    %676 = vmatpush1.msra.mxu0 0.0
    %677 = vmatprep.subr.mxu0 0.0
    %678 = vmatpush1.msra.mxu0 0.0
    %679 = vmatprep.subr.mxu0 0.0
    %680 = vmatpush1.msra.mxu0 0.0
    %681 = vmatprep.subr.mxu0 0.0
    %682 = vmatpush1.msra.mxu0 0.0
    %683 = vmatprep.subr.mxu0 0.0
    %684 = vmatpush1.msra.mxu0 0.0
    %685 = vmatprep.subr.mxu0 0.0
    %686 = vmatpush1.msra.mxu0 0.0
    %687 = vmatprep.subr.mxu0 0.0
    %688 = vmatpush1.msra.mxu0 0.0
    %689 = vmatprep.subr.mxu0 0.0
    %690 = vmatpush1.msra.mxu0 0.0
    %691 = vmatprep.subr.mxu0 0.0
    %692 = vmatpush1.msra.mxu0 0.0
    %693 = vmatprep.subr.mxu0 0.0
    %694 = vmatpush1.msra.mxu0 0.0
    %695 = vmatprep.subr.mxu0 0.0
    %696 = vmatpush1.msra.mxu0 0.0
    %697 = vmatprep.subr.mxu0 0.0
    %698 = vmatpush1.msra.mxu0 0.0
    %699 = vmatprep.subr.mxu0 0.0
    %700 = vmatpush1.msra.mxu0 0.0
    %701 = vmatprep.subr.mxu0 0.0
    %702 = vmatpush1.msra.mxu0 0.0
    %703 = vmatprep.subr.mxu0 0.0
    %704 = vmatpush1.msra.mxu0 0.0
    %705 = vmatprep.subr.mxu0 0.0
    %706 = vmatpush1.msra.mxu0 0.0
    %707 = vmatprep.subr.mxu0 0.0
    %708 = vmatpush1.msra.mxu0 0.0
    %709 = vmatprep.subr.mxu0 0.0
    %710 = vmatpush1.msra.mxu0 0.0
    %711 = vmatprep.subr.mxu0 0.0
    %712 = vmatpush1.msra.mxu0 0.0
    %713 = vmatprep.subr.mxu0 0.0
    %714 = vmatpush1.msra.mxu0 0.0
    %715 = vmatprep.subr.mxu0 0.0
    %716 = vmatpush1.msra.mxu0 0.0
    %717 = vmatprep.subr.mxu0 0.0
    %718 = vmatpush1.msra.mxu0 0.0
    %719 = vmatprep.subr.mxu0 0.0
    %720 = vmatpush1.msra.mxu0 0.0
    %721 = vmatprep.subr.mxu0 0.0
    %722 = vmatpush1.msra.mxu0 0.0
    %723 = vmatprep.subr.mxu0 0.0
    %724 = vmatpush1.msra.mxu0 0.0
    %725 = vmatprep.subr.mxu0 0.0
    %726 = vmatpush1.msra.mxu0 0.0
    %727 = vmatprep.subr.mxu0 0.0
    %728 = vmatpush1.msra.mxu0 0.0
    %729 = vmatprep.subr.mxu0 0.0
    %730 = vmatpush1.msra.mxu0 0.0
    %731 = vmatprep.mubr.f32.mxu0 0.0
    %732 = vmatmul.mubr.f32.gmra.mrb[0].mxu0 %v665
    %v733 = vpop.f32.mrb[0].mxu0
    %v734 = vadd.f32 %v589, %v733
    %v735 = vpop.f32.mrb[0].mxu0
    %736 = vdwg.mxu0
    %v737 = vmax.f32 %v734, 0.0
    %v738 = vld [vmem:[%s2] sm:$0x1]
    %v739 = vld [vmem:[#allocation3 + $0x60] sm:$0x3f]
    %v740 = vld [vmem:[#allocation3 + $0x162] sm:$0x1]
    %vm741 = vcmask 48128
    %v743 = vsel %vm741, %v738, 0
    %vm745 = vcmask 1045504
    %v747 = vsel %vm745, %v739, 0
    %749 = vmatprep.subr.mxu0 0.0
    %750 = vmatpush1.msra.mxu0 %v747
    %751 = vmatprep.subr.mxu0 0.0
    %752 = vmatpush1.msra.mxu0 0.0
    %753 = vmatprep.subr.mxu0 0.0
    %754 = vmatpush1.msra.mxu0 0.0
    %755 = vmatprep.subr.mxu0 0.0
    %756 = vmatpush1.msra.mxu0 0.0
    %757 = vmatprep.subr.mxu0 0.0
    %758 = vmatpush1.msra.mxu0 0.0
    %759 = vmatprep.subr.mxu0 0.0
    %760 = vmatpush1.msra.mxu0 0.0
    %761 = vmatprep.subr.mxu0 0.0
    %762 = vmatpush1.msra.mxu0 0.0
    %763 = vmatprep.subr.mxu0 0.0
    %764 = vmatpush1.msra.mxu0 0.0
    %765 = vmatprep.subr.mxu0 0.0
    %766 = vmatpush1.msra.mxu0 0.0
    %767 = vmatprep.subr.mxu0 0.0
    %768 = vmatpush1.msra.mxu0 0.0
    %769 = vmatprep.subr.mxu0 0.0
    %770 = vmatpush1.msra.mxu0 0.0
    %771 = vmatprep.subr.mxu0 0.0
    %772 = vmatpush1.msra.mxu0 0.0
    %773 = vmatprep.subr.mxu0 0.0
    %774 = vmatpush1.msra.mxu0 0.0
    %775 = vmatprep.subr.mxu0 0.0
    %776 = vmatpush1.msra.mxu0 0.0
    %777 = vmatprep.subr.mxu0 0.0
    %778 = vmatpush1.msra.mxu0 0.0
    %779 = vmatprep.subr.mxu0 0.0
    %780 = vmatpush1.msra.mxu0 0.0
    %781 = vmatprep.subr.mxu0 0.0
    %782 = vmatpush1.msra.mxu0 0.0
    %783 = vmatprep.subr.mxu0 0.0
    %784 = vmatpush1.msra.mxu0 0.0
    %785 = vmatprep.subr.mxu0 0.0
    %786 = vmatpush1.msra.mxu0 0.0
    %787 = vmatprep.subr.mxu0 0.0
    %788 = vmatpush1.msra.mxu0 0.0
    %789 = vmatprep.subr.mxu0 0.0
    %790 = vmatpush1.msra.mxu0 0.0
    %791 = vmatprep.subr.mxu0 0.0
    %792 = vmatpush1.msra.mxu0 0.0
    %793 = vmatprep.subr.mxu0 0.0
    %794 = vmatpush1.msra.mxu0 0.0
    %795 = vmatprep.subr.mxu0 0.0
    %796 = vmatpush1.msra.mxu0 0.0
    %797 = vmatprep.subr.mxu0 0.0
    %798 = vmatpush1.msra.mxu0 0.0
    %799 = vmatprep.subr.mxu0 0.0
    %800 = vmatpush1.msra.mxu0 0.0
    %801 = vmatprep.subr.mxu0 0.0
    %802 = vmatpush1.msra.mxu0 0.0
    %803 = vmatprep.subr.mxu0 0.0
    %804 = vmatpush1.msra.mxu0 0.0
    %805 = vmatprep.subr.mxu0 0.0
    %806 = vmatpush1.msra.mxu0 0.0
    %807 = vmatprep.subr.mxu0 0.0
    %808 = vmatpush1.msra.mxu0 0.0
    %809 = vmatprep.subr.mxu0 0.0
    %810 = vmatpush1.msra.mxu0 0.0
    %811 = vmatprep.subr.mxu0 0.0
    %812 = vmatpush1.msra.mxu0 0.0
    %813 = vmatprep.mubr.f32.mxu0 0.0
    %814 = vmatmul.mubr.f32.gmra.mrb[0].mxu0 %v743
    %v815 = vpop.f32.mrb[0].mxu0
    %v816 = vadd.f32 %v740, %v815
    %v817 = vpop.f32.mrb[0].mxu0
    %818 = vdwg.mxu0
    %v819 = vmax.f32 %v816, 0.0
    %v820 = vld [vmem:[#allocation3 + $0x68] sm:$0xff]
    %v821 = vld [vmem:[#allocation3 + $0x70] sm:$0xff]
    %v822 = vld [vmem:[#allocation3 + $0x78] sm:$0xff]
    %v823 = vld [vmem:[#allocation3 + $0x80] sm:$0xff]
    %v824 = vld [vmem:[#allocation3 + $0x88] sm:$0xff]
    %v825 = vld [vmem:[#allocation3 + $0x90] sm:$0xff]
    %v826 = vld [vmem:[#allocation3 + $0x98] sm:$0xff]
    %v827 = vld [vmem:[#allocation3 + $0xa0] sm:$0xff]
    %vm828 = vcmask 261120
    %v830 = vsel %vm828, %v737, 0
    %832 = vmatprep.subr.mxu0 0.0
    %833 = vmatpush1.msra.mxu0 %v824
    %834 = vmatprep.subr.mxu0 0.0
    %835 = vmatpush1.msra.mxu0 %v825
    %836 = vmatprep.subr.mxu0 0.0
    %837 = vmatpush1.msra.mxu0 %v826
    %838 = vmatprep.subr.mxu0 0.0
    %839 = vmatpush1.msra.mxu0 %v827
    %840 = vmatprep.subr.mxu0 0.0
    %841 = vmatpush1.msra.mxu0 0.0
    %842 = vmatprep.subr.mxu0 0.0
    %843 = vmatpush1.msra.mxu0 0.0
    %844 = vmatprep.subr.mxu0 0.0
    %845 = vmatpush1.msra.mxu0 0.0
    %846 = vmatprep.subr.mxu0 0.0
    %847 = vmatpush1.msra.mxu0 0.0
    %848 = vmatprep.subr.mxu0 0.0
    %849 = vmatpush1.msra.mxu0 0.0
    %850 = vmatprep.subr.mxu0 0.0
    %851 = vmatpush1.msra.mxu0 0.0
    %852 = vmatprep.subr.mxu0 0.0
    %853 = vmatpush1.msra.mxu0 0.0
    %854 = vmatprep.subr.mxu0 0.0
    %855 = vmatpush1.msra.mxu0 0.0
    %856 = vmatprep.subr.mxu0 0.0
    %857 = vmatpush1.msra.mxu0 0.0
    %858 = vmatprep.subr.mxu0 0.0
    %859 = vmatpush1.msra.mxu0 0.0
    %860 = vmatprep.subr.mxu0 0.0
    %861 = vmatpush1.msra.mxu0 0.0
    %862 = vmatprep.subr.mxu0 0.0
    %863 = vmatpush1.msra.mxu0 0.0
    %864 = vmatprep.subr.mxu0 0.0
    %865 = vmatpush1.msra.mxu0 0.0
    %866 = vmatprep.subr.mxu0 0.0
    %867 = vmatpush1.msra.mxu0 0.0
    %868 = vmatprep.subr.mxu0 0.0
    %869 = vmatpush1.msra.mxu0 0.0
    %870 = vmatprep.subr.mxu0 0.0
    %871 = vmatpush1.msra.mxu0 0.0
    %872 = vmatprep.subr.mxu0 0.0
    %873 = vmatpush1.msra.mxu0 0.0
    %874 = vmatprep.subr.mxu0 0.0
    %875 = vmatpush1.msra.mxu0 0.0
    %876 = vmatprep.subr.mxu0 0.0
    %877 = vmatpush1.msra.mxu0 0.0
    %878 = vmatprep.subr.mxu0 0.0
    %879 = vmatpush1.msra.mxu0 0.0
    %880 = vmatprep.subr.mxu0 0.0
    %881 = vmatpush1.msra.mxu0 0.0
    %882 = vmatprep.subr.mxu0 0.0
    %883 = vmatpush1.msra.mxu0 0.0
    %884 = vmatprep.subr.mxu0 0.0
    %885 = vmatpush1.msra.mxu0 0.0
    %886 = vmatprep.subr.mxu0 0.0
    %887 = vmatpush1.msra.mxu0 0.0
    %888 = vmatprep.subr.mxu0 0.0
    %889 = vmatpush1.msra.mxu0 0.0
    %890 = vmatprep.subr.mxu0 0.0
    %891 = vmatpush1.msra.mxu0 0.0
    %892 = vmatprep.subr.mxu0 0.0
    %893 = vmatpush1.msra.mxu0 0.0
    %894 = vmatprep.subr.mxu0 0.0
    %895 = vmatpush1.msra.mxu0 0.0
    %896 = vmatprep.mubr.f32.mxu0 0.0
    %897 = vmatmul.mubr.f32.gmra.mrb[0].mxu0 %v830
    %v898 = vpop.f32.mrb[0].mxu0
    %v899 = vadd.f32 0.0, %v898
    %v900 = vpop.f32.mrb[0].mxu0
    %901 = vdwg.mxu0
    %v903 = vsel %vm828, %v663, 0
    %905 = vmatprep.subr.mxu0 0.0
    %906 = vmatpush1.msra.mxu0 %v820
    %907 = vmatprep.subr.mxu0 0.0
    %908 = vmatpush1.msra.mxu0 %v821
    %909 = vmatprep.subr.mxu0 0.0
    %910 = vmatpush1.msra.mxu0 %v822
    %911 = vmatprep.subr.mxu0 0.0
    %912 = vmatpush1.msra.mxu0 %v823
    %913 = vmatprep.subr.mxu0 0.0
    %914 = vmatpush1.msra.mxu0 0.0
    %915 = vmatprep.subr.mxu0 0.0
    %916 = vmatpush1.msra.mxu0 0.0
    %917 = vmatprep.subr.mxu0 0.0
    %918 = vmatpush1.msra.mxu0 0.0
    %919 = vmatprep.subr.mxu0 0.0
    %920 = vmatpush1.msra.mxu0 0.0
    %921 = vmatprep.subr.mxu0 0.0
    %922 = vmatpush1.msra.mxu0 0.0
    %923 = vmatprep.subr.mxu0 0.0
    %924 = vmatpush1.msra.mxu0 0.0
    %925 = vmatprep.subr.mxu0 0.0
    %926 = vmatpush1.msra.mxu0 0.0
    %927 = vmatprep.subr.mxu0 0.0
    %928 = vmatpush1.msra.mxu0 0.0
    %929 = vmatprep.subr.mxu0 0.0
    %930 = vmatpush1.msra.mxu0 0.0
    %931 = vmatprep.subr.mxu0 0.0
    %932 = vmatpush1.msra.mxu0 0.0
    %933 = vmatprep.subr.mxu0 0.0
    %934 = vmatpush1.msra.mxu0 0.0
    %935 = vmatprep.subr.mxu0 0.0
    %936 = vmatpush1.msra.mxu0 0.0
    %937 = vmatprep.subr.mxu0 0.0
    %938 = vmatpush1.msra.mxu0 0.0
    %939 = vmatprep.subr.mxu0 0.0
    %940 = vmatpush1.msra.mxu0 0.0
    %941 = vmatprep.subr.mxu0 0.0
    %942 = vmatpush1.msra.mxu0 0.0
    %943 = vmatprep.subr.mxu0 0.0
    %944 = vmatpush1.msra.mxu0 0.0
    %945 = vmatprep.subr.mxu0 0.0
    %946 = vmatpush1.msra.mxu0 0.0
    %947 = vmatprep.subr.mxu0 0.0
    %948 = vmatpush1.msra.mxu0 0.0
    %949 = vmatprep.subr.mxu0 0.0
    %950 = vmatpush1.msra.mxu0 0.0
    %951 = vmatprep.subr.mxu0 0.0
    %952 = vmatpush1.msra.mxu0 0.0
    %953 = vmatprep.subr.mxu0 0.0
    %954 = vmatpush1.msra.mxu0 0.0
    %955 = vmatprep.subr.mxu0 0.0
    %956 = vmatpush1.msra.mxu0 0.0
    %957 = vmatprep.subr.mxu0 0.0
    %958 = vmatpush1.msra.mxu0 0.0
    %959 = vmatprep.subr.mxu0 0.0
    %960 = vmatpush1.msra.mxu0 0.0
    %961 = vmatprep.subr.mxu0 0.0
    %962 = vmatpush1.msra.mxu0 0.0
    %963 = vmatprep.subr.mxu0 0.0
    %964 = vmatpush1.msra.mxu0 0.0
    %965 = vmatprep.subr.mxu0 0.0
    %966 = vmatpush1.msra.mxu0 0.0
    %967 = vmatprep.subr.mxu0 0.0
    %968 = vmatpush1.msra.mxu0 0.0
    %969 = vmatprep.mubr.f32.mxu0 0.0
    %970 = vmatmul.mubr.f32.gmra.mrb[0].mxu0 %v903
    %v971 = vpop.f32.mrb[0].mxu0
    %v972 = vadd.f32 %v899, %v971
    %v973 = vpop.f32.mrb[0].mxu0
    %974 = vdwg.mxu0
    %v975 = vld [vmem:[#allocation3 + $0xa8] sm:$0xff]
    %v976 = vld [vmem:[#allocation3 + $0xb0] sm:$0xff]
    %v977 = vld [vmem:[#allocation3 + $0xb8] sm:$0xff]
    %v978 = vld [vmem:[#allocation3 + $0xc0] sm:$0xff]
    %v980 = vsel %vm828, %v819, 0
    %982 = vmatprep.subr.mxu0 0.0
    %983 = vmatpush1.msra.mxu0 %v975
    %984 = vmatprep.subr.mxu0 0.0
    %985 = vmatpush1.msra.mxu0 %v976
    %986 = vmatprep.subr.mxu0 0.0
    %987 = vmatpush1.msra.mxu0 %v977
    %988 = vmatprep.subr.mxu0 0.0
    %989 = vmatpush1.msra.mxu0 %v978
    %990 = vmatprep.subr.mxu0 0.0
    %991 = vmatpush1.msra.mxu0 0.0
    %992 = vmatprep.subr.mxu0 0.0
    %993 = vmatpush1.msra.mxu0 0.0
    %994 = vmatprep.subr.mxu0 0.0
    %995 = vmatpush1.msra.mxu0 0.0
    %996 = vmatprep.subr.mxu0 0.0
    %997 = vmatpush1.msra.mxu0 0.0
    %998 = vmatprep.subr.mxu0 0.0
    %999 = vmatpush1.msra.mxu0 0.0
    %1000 = vmatprep.subr.mxu0 0.0
    %1001 = vmatpush1.msra.mxu0 0.0
    %1002 = vmatprep.subr.mxu0 0.0
    %1003 = vmatpush1.msra.mxu0 0.0
    %1004 = vmatprep.subr.mxu0 0.0
    %1005 = vmatpush1.msra.mxu0 0.0
    %1006 = vmatprep.subr.mxu0 0.0
    %1007 = vmatpush1.msra.mxu0 0.0
    %1008 = vmatprep.subr.mxu0 0.0
    %1009 = vmatpush1.msra.mxu0 0.0
    %1010 = vmatprep.subr.mxu0 0.0
    %1011 = vmatpush1.msra.mxu0 0.0
    %1012 = vmatprep.subr.mxu0 0.0
    %1013 = vmatpush1.msra.mxu0 0.0
    %1014 = vmatprep.subr.mxu0 0.0
    %1015 = vmatpush1.msra.mxu0 0.0
    %1016 = vmatprep.subr.mxu0 0.0
    %1017 = vmatpush1.msra.mxu0 0.0
    %1018 = vmatprep.subr.mxu0 0.0
    %1019 = vmatpush1.msra.mxu0 0.0
    %1020 = vmatprep.subr.mxu0 0.0
    %1021 = vmatpush1.msra.mxu0 0.0
    %1022 = vmatprep.subr.mxu0 0.0
    %1023 = vmatpush1.msra.mxu0 0.0
    %1024 = vmatprep.subr.mxu0 0.0
    %1025 = vmatpush1.msra.mxu0 0.0
    %1026 = vmatprep.subr.mxu0 0.0
    %1027 = vmatpush1.msra.mxu0 0.0
    %1028 = vmatprep.subr.mxu0 0.0
    %1029 = vmatpush1.msra.mxu0 0.0
    %1030 = vmatprep.subr.mxu0 0.0
    %1031 = vmatpush1.msra.mxu0 0.0
    %1032 = vmatprep.subr.mxu0 0.0
    %1033 = vmatpush1.msra.mxu0 0.0
    %1034 = vmatprep.subr.mxu0 0.0
    %1035 = vmatpush1.msra.mxu0 0.0
    %1036 = vmatprep.subr.mxu0 0.0
    %1037 = vmatpush1.msra.mxu0 0.0
    %1038 = vmatprep.subr.mxu0 0.0
    %1039 = vmatpush1.msra.mxu0 0.0
    %1040 = vmatprep.subr.mxu0 0.0
    %1041 = vmatpush1.msra.mxu0 0.0
    %1042 = vmatprep.subr.mxu0 0.0
    %1043 = vmatpush1.msra.mxu0 0.0
    %1044 = vmatprep.subr.mxu0 0.0
    %1045 = vmatpush1.msra.mxu0 0.0
    %1046 = vmatprep.mubr.f32.mxu0 0.0
    %1047 = vmatmul.mubr.f32.gmra.mrb[0].mxu0 %v980
    %v1048 = vpop.f32.mrb[0].mxu0
    %v1049 = vadd.f32 0.0, %v1048
    %v1050 = vpop.f32.mrb[0].mxu0
    %1051 = vdwg.mxu0
    %v1052 = vadd.f32 %v972, %v1049
    %v1053 = vld [vmem:[#allocation3 + $0x163] sm:$0x1]
    %v1054 = vadd.f32 %v1052, %v1053
    %v1055 = vmax.f32 %v1054, 0.0
    %v1056 = vld [vmem:[#allocation6] sm:$0xff]
    %v1057 = vld [vmem:[#allocation6 + $0x8] sm:$0xff]
    %v1058 = vld [vmem:[#allocation6 + $0x10] sm:$0xff]
    %v1059 = vld [vmem:[#allocation6 + $0x18] sm:$0xff]
    %v1060 = vld [vmem:[#allocation6 + $0x20] sm:$0xff]
    %v1061 = vld [vmem:[#allocation6 + $0x28] sm:$0xff]
    %v1062 = vld [vmem:[#allocation6 + $0x30] sm:$0xff]
    %v1063 = vld [vmem:[#allocation6 + $0x38] sm:$0xff]
    %s1064 = scalar_lea.vmem [#allocation6], 64
    %v1065 = vld [vmem:[%s1064] ss:$8 sm:$0x3]
    %v1067 = vlaneseq
    %v1068 = vshrl.u32 %v1067, 7
    %v1069 = vsub.s32 0, %v1068
    %v1070 = vrot.slane %v1065, %v1069
    %v1071 = vlaneseq
    %v1072 = vshrl.u32 %v1071, 7
    %v1073 = vsub.s32 1, %v1072
    %v1074 = vrot.slane %v1065, %v1073
    %v1078 = vsel %vm828, %v1055, 0
    %1080 = vmatprep.subr.mxu0 %v1057
    %1081 = vmatpush1.msra.mxu0 %v1056
    %1082 = vmatprep.subr.mxu0 %v1059
    %1083 = vmatpush1.msra.mxu0 %v1058
    %1084 = vmatprep.subr.mxu0 %v1061
    %1085 = vmatpush1.msra.mxu0 %v1060
    %1086 = vmatprep.subr.mxu0 %v1063
    %1087 = vmatpush1.msra.mxu0 %v1062
    %1088 = vmatprep.subr.mxu0 0.0
    %1089 = vmatpush1.msra.mxu0 0.0
    %1090 = vmatprep.subr.mxu0 0.0
    %1091 = vmatpush1.msra.mxu0 0.0
    %1092 = vmatprep.subr.mxu0 0.0
    %1093 = vmatpush1.msra.mxu0 0.0
    %1094 = vmatprep.subr.mxu0 0.0
    %1095 = vmatpush1.msra.mxu0 0.0
    %1096 = vmatprep.subr.mxu0 0.0
    %1097 = vmatpush1.msra.mxu0 0.0
    %1098 = vmatprep.subr.mxu0 0.0
    %1099 = vmatpush1.msra.mxu0 0.0
    %1100 = vmatprep.subr.mxu0 0.0
    %1101 = vmatpush1.msra.mxu0 0.0
    %1102 = vmatprep.subr.mxu0 0.0
    %1103 = vmatpush1.msra.mxu0 0.0
    %1104 = vmatprep.subr.mxu0 0.0
    %1105 = vmatpush1.msra.mxu0 0.0
    %1106 = vmatprep.subr.mxu0 0.0
    %1107 = vmatpush1.msra.mxu0 0.0
    %1108 = vmatprep.subr.mxu0 0.0
    %1109 = vmatpush1.msra.mxu0 0.0
    %1110 = vmatprep.subr.mxu0 0.0
    %1111 = vmatpush1.msra.mxu0 0.0
    %1112 = vmatprep.subr.mxu0 0.0
    %1113 = vmatpush1.msra.mxu0 0.0
    %1114 = vmatprep.subr.mxu0 0.0
    %1115 = vmatpush1.msra.mxu0 0.0
    %1116 = vmatprep.subr.mxu0 0.0
    %1117 = vmatpush1.msra.mxu0 0.0
    %1118 = vmatprep.subr.mxu0 0.0
    %1119 = vmatpush1.msra.mxu0 0.0
    %1120 = vmatprep.subr.mxu0 0.0
    %1121 = vmatpush1.msra.mxu0 0.0
    %1122 = vmatprep.subr.mxu0 0.0
    %1123 = vmatpush1.msra.mxu0 0.0
    %1124 = vmatprep.subr.mxu0 0.0
    %1125 = vmatpush1.msra.mxu0 0.0
    %1126 = vmatprep.subr.mxu0 0.0
    %1127 = vmatpush1.msra.mxu0 0.0
    %1128 = vmatprep.subr.mxu0 0.0
    %1129 = vmatpush1.msra.mxu0 0.0
    %1130 = vmatprep.subr.mxu0 0.0
    %1131 = vmatpush1.msra.mxu0 0.0
    %1132 = vmatprep.subr.mxu0 0.0
    %1133 = vmatpush1.msra.mxu0 0.0
    %1134 = vmatprep.subr.mxu0 0.0
    %1135 = vmatpush1.msra.mxu0 0.0
    %1136 = vmatprep.subr.mxu0 0.0
    %1137 = vmatpush1.msra.mxu0 0.0
    %1138 = vmatprep.subr.mxu0 0.0
    %1139 = vmatpush1.msra.mxu0 0.0
    %1140 = vmatprep.subr.mxu0 0.0
    %1141 = vmatpush1.msra.mxu0 0.0
    %1142 = vmatprep.subr.mxu0 0.0
    %1143 = vmatpush1.msra.mxu0 0.0
    %1144 = vmatprep.mubr.f32.mxu0 0.0
    %1145 = vmatmul.mubr.f32.gmra.mrb[0].mxu0 %v1078
    %v1146 = vpop.f32.mrb[0].mxu0
    %v1147 = vadd.f32 %v1070, %v1146
    %v1148 = vpop.f32.mrb[0].mxu0
    %v1149 = vadd.f32 %v1074, %v1148
    %1150 = vdwg.mxu0
    %v1151 = vsub.f32 0.0, %v1147
    %v1152 = vmul.f32 %v1151, 1.442695
    %v1153 = vpow.pop %v1152
    %v1154 = vadd.f32 %v1153, 1.0
    %v1155 = vrcp.pop %v1154
    %v1156 = vmul.f32 1.0, %v1155
    %v1157 = vtanh.pop %v1147
    %v1158 = vsub.f32 0.0, %v1149
    %v1159 = vmul.f32 %v1158, 1.442695
    %v1160 = vpow.pop %v1159
    %v1161 = vadd.f32 %v1160, 1.0
    %v1162 = vrcp.pop %v1161
    %v1163 = vmul.f32 1.0, %v1162
    %1165 = vrot.lane.b32.xlu0 %v1157, 64
    %v1166 = vpop.permute.xlu0 %1165
    %v1168 = vmul.f32 %v1156, %v1166
    %v1169 = vtanh.pop %v1168
    %v1170 = vmul.f32 %v1163, %v1169
    %v1171 = vld [vmem:[#allocation3 + $0xc8] sm:$0xff]
    %v1172 = vld [vmem:[#allocation3 + $0xd0] sm:$0xff]
    %v1173 = vld [vmem:[#allocation3 + $0xd8] sm:$0xff]
    %v1174 = vld [vmem:[#allocation3 + $0xe0] sm:$0xff]
    %v1175 = vld [vmem:[#allocation3 + $0xe8] sm:$0xff]
    %v1176 = vld [vmem:[#allocation3 + $0xf0] sm:$0xff]
    %v1177 = vld [vmem:[#allocation3 + $0xf8] sm:$0xff]
    %v1178 = vld [vmem:[#allocation3 + $0x100] sm:$0xff]
    %v1179 = vld [vmem:[#allocation3 + $0x164] sm:$0x1]
    %vm1180 = vcmask 523264
    %v1182 = vsel %vm1180, %v1170, 0
    %1184 = vmatprep.subr.mxu0 0.0
    %1185 = vmatpush1.msra.mxu0 %v1171
    %1186 = vmatprep.subr.mxu0 0.0
    %1187 = vmatpush1.msra.mxu0 %v1172
    %1188 = vmatprep.subr.mxu0 0.0
    %1189 = vmatpush1.msra.mxu0 %v1173
    %1190 = vmatprep.subr.mxu0 0.0
    %1191 = vmatpush1.msra.mxu0 %v1174
    %1192 = vmatprep.subr.mxu0 0.0
    %1193 = vmatpush1.msra.mxu0 %v1175
    %1194 = vmatprep.subr.mxu0 0.0
    %1195 = vmatpush1.msra.mxu0 %v1176
    %1196 = vmatprep.subr.mxu0 0.0
    %1197 = vmatpush1.msra.mxu0 %v1177
    %1198 = vmatprep.subr.mxu0 0.0
    %1199 = vmatpush1.msra.mxu0 %v1178
    %1200 = vmatprep.subr.mxu0 0.0
    %1201 = vmatpush1.msra.mxu0 0.0
    %1202 = vmatprep.subr.mxu0 0.0
    %1203 = vmatpush1.msra.mxu0 0.0
    %1204 = vmatprep.subr.mxu0 0.0
    %1205 = vmatpush1.msra.mxu0 0.0
    %1206 = vmatprep.subr.mxu0 0.0
    %1207 = vmatpush1.msra.mxu0 0.0
    %1208 = vmatprep.subr.mxu0 0.0
    %1209 = vmatpush1.msra.mxu0 0.0
    %1210 = vmatprep.subr.mxu0 0.0
    %1211 = vmatpush1.msra.mxu0 0.0
    %1212 = vmatprep.subr.mxu0 0.0
    %1213 = vmatpush1.msra.mxu0 0.0
    %1214 = vmatprep.subr.mxu0 0.0
    %1215 = vmatpush1.msra.mxu0 0.0
    %1216 = vmatprep.subr.mxu0 0.0
    %1217 = vmatpush1.msra.mxu0 0.0
    %1218 = vmatprep.subr.mxu0 0.0
    %1219 = vmatpush1.msra.mxu0 0.0
    %1220 = vmatprep.subr.mxu0 0.0
    %1221 = vmatpush1.msra.mxu0 0.0
    %1222 = vmatprep.subr.mxu0 0.0
    %1223 = vmatpush1.msra.mxu0 0.0
    %1224 = vmatprep.subr.mxu0 0.0
    %1225 = vmatpush1.msra.mxu0 0.0
    %1226 = vmatprep.subr.mxu0 0.0
    %1227 = vmatpush1.msra.mxu0 0.0
    %1228 = vmatprep.subr.mxu0 0.0
    %1229 = vmatpush1.msra.mxu0 0.0
    %1230 = vmatprep.subr.mxu0 0.0
    %1231 = vmatpush1.msra.mxu0 0.0
    %1232 = vmatprep.subr.mxu0 0.0
    %1233 = vmatpush1.msra.mxu0 0.0
    %1234 = vmatprep.subr.mxu0 0.0
    %1235 = vmatpush1.msra.mxu0 0.0
    %1236 = vmatprep.subr.mxu0 0.0
    %1237 = vmatpush1.msra.mxu0 0.0
    %1238 = vmatprep.subr.mxu0 0.0
    %1239 = vmatpush1.msra.mxu0 0.0
    %1240 = vmatprep.subr.mxu0 0.0
    %1241 = vmatpush1.msra.mxu0 0.0
    %1242 = vmatprep.subr.mxu0 0.0
    %1243 = vmatpush1.msra.mxu0 0.0
    %1244 = vmatprep.subr.mxu0 0.0
    %1245 = vmatpush1.msra.mxu0 0.0
    %1246 = vmatprep.subr.mxu0 0.0
    %1247 = vmatpush1.msra.mxu0 0.0
    %1248 = vmatprep.mubr.f32.mxu0 0.0
    %1249 = vmatmul.mubr.f32.gmra.mrb[0].mxu0 %v1182
    %v1250 = vpop.f32.mrb[0].mxu0
    %v1251 = vadd.f32 %v1179, %v1250
    %v1252 = vpop.f32.mrb[0].mxu0
    %1253 = vdwg.mxu0
    %v1254 = vmax.f32 %v1251, 0.0
    %v1255 = vld [vmem:[#allocation3 + $0x108] sm:$0xff]
    %v1256 = vld [vmem:[#allocation3 + $0x110] sm:$0xff]
    %v1257 = vld [vmem:[#allocation3 + $0x118] sm:$0xff]
    %v1258 = vld [vmem:[#allocation3 + $0x120] sm:$0xff]
    %v1259 = vld [vmem:[#allocation3 + $0x165] sm:$0x1]
    %v1261 = vsel %vm828, %v1254, 0
    %1263 = vmatprep.subr.mxu0 0.0
    %1264 = vmatpush1.msra.mxu0 %v1255
    %1265 = vmatprep.subr.mxu0 0.0
    %1266 = vmatpush1.msra.mxu0 %v1256
    %1267 = vmatprep.subr.mxu0 0.0
    %1268 = vmatpush1.msra.mxu0 %v1257
    %1269 = vmatprep.subr.mxu0 0.0
    %1270 = vmatpush1.msra.mxu0 %v1258
    %1271 = vmatprep.subr.mxu0 0.0
    %1272 = vmatpush1.msra.mxu0 0.0
    %1273 = vmatprep.subr.mxu0 0.0
    %1274 = vmatpush1.msra.mxu0 0.0
    %1275 = vmatprep.subr.mxu0 0.0
    %1276 = vmatpush1.msra.mxu0 0.0
    %1277 = vmatprep.subr.mxu0 0.0
    %1278 = vmatpush1.msra.mxu0 0.0
    %1279 = vmatprep.subr.mxu0 0.0
    %1280 = vmatpush1.msra.mxu0 0.0
    %1281 = vmatprep.subr.mxu0 0.0
    %1282 = vmatpush1.msra.mxu0 0.0
    %1283 = vmatprep.subr.mxu0 0.0
    %1284 = vmatpush1.msra.mxu0 0.0
    %1285 = vmatprep.subr.mxu0 0.0
    %1286 = vmatpush1.msra.mxu0 0.0
    %1287 = vmatprep.subr.mxu0 0.0
    %1288 = vmatpush1.msra.mxu0 0.0
    %1289 = vmatprep.subr.mxu0 0.0
    %1290 = vmatpush1.msra.mxu0 0.0
    %1291 = vmatprep.subr.mxu0 0.0
    %1292 = vmatpush1.msra.mxu0 0.0
    %1293 = vmatprep.subr.mxu0 0.0
    %1294 = vmatpush1.msra.mxu0 0.0
    %1295 = vmatprep.subr.mxu0 0.0
    %1296 = vmatpush1.msra.mxu0 0.0
    %1297 = vmatprep.subr.mxu0 0.0
    %1298 = vmatpush1.msra.mxu0 0.0
    %1299 = vmatprep.subr.mxu0 0.0
    %1300 = vmatpush1.msra.mxu0 0.0
    %1301 = vmatprep.subr.mxu0 0.0
    %1302 = vmatpush1.msra.mxu0 0.0
    %1303 = vmatprep.subr.mxu0 0.0
    %1304 = vmatpush1.msra.mxu0 0.0
    %1305 = vmatprep.subr.mxu0 0.0
    %1306 = vmatpush1.msra.mxu0 0.0
    %1307 = vmatprep.subr.mxu0 0.0
    %1308 = vmatpush1.msra.mxu0 0.0
    %1309 = vmatprep.subr.mxu0 0.0
    %1310 = vmatpush1.msra.mxu0 0.0
    %1311 = vmatprep.subr.mxu0 0.0
    %1312 = vmatpush1.msra.mxu0 0.0
    %1313 = vmatprep.subr.mxu0 0.0
    %1314 = vmatpush1.msra.mxu0 0.0
    %1315 = vmatprep.subr.mxu0 0.0
    %1316 = vmatpush1.msra.mxu0 0.0
    %1317 = vmatprep.subr.mxu0 0.0
    %1318 = vmatpush1.msra.mxu0 0.0
    %1319 = vmatprep.subr.mxu0 0.0
    %1320 = vmatpush1.msra.mxu0 0.0
    %1321 = vmatprep.subr.mxu0 0.0
    %1322 = vmatpush1.msra.mxu0 0.0
    %1323 = vmatprep.subr.mxu0 0.0
    %1324 = vmatpush1.msra.mxu0 0.0
    %1325 = vmatprep.subr.mxu0 0.0
    %1326 = vmatpush1.msra.mxu0 0.0
    %1327 = vmatprep.mubr.f32.mxu0 0.0
    %1328 = vmatmul.mubr.f32.gmra.mrb[0].mxu0 %v1261
    %v1329 = vpop.f32.mrb[0].mxu0
    %v1330 = vadd.f32 %v1259, %v1329
    %v1331 = vpop.f32.mrb[0].mxu0
    %1332 = vdwg.mxu0
    %v1333 = vsub.f32 %v1330, %v49
    %v1334 = vld [vmem:[#allocation3 + $0x128] sm:$0xff]
    %v1335 = vld [vmem:[#allocation3 + $0x166] sm:$0x1]
    %v1337 = vsel %vm86, %v1333, 0
    %1339 = vmatprep.subr.mxu0 0.0
    %1340 = vmatpush1.msra.mxu0 %v1334
    %1341 = vmatprep.subr.mxu0 0.0
    %1342 = vmatpush1.msra.mxu0 0.0
    %1343 = vmatprep.subr.mxu0 0.0
    %1344 = vmatpush1.msra.mxu0 0.0
    %1345 = vmatprep.subr.mxu0 0.0
    %1346 = vmatpush1.msra.mxu0 0.0
    %1347 = vmatprep.subr.mxu0 0.0
    %1348 = vmatpush1.msra.mxu0 0.0
    %1349 = vmatprep.subr.mxu0 0.0
    %1350 = vmatpush1.msra.mxu0 0.0
    %1351 = vmatprep.subr.mxu0 0.0
    %1352 = vmatpush1.msra.mxu0 0.0
    %1353 = vmatprep.subr.mxu0 0.0
    %1354 = vmatpush1.msra.mxu0 0.0
    %1355 = vmatprep.subr.mxu0 0.0
    %1356 = vmatpush1.msra.mxu0 0.0
    %1357 = vmatprep.subr.mxu0 0.0
    %1358 = vmatpush1.msra.mxu0 0.0
    %1359 = vmatprep.subr.mxu0 0.0
    %1360 = vmatpush1.msra.mxu0 0.0
    %1361 = vmatprep.subr.mxu0 0.0
    %1362 = vmatpush1.msra.mxu0 0.0
    %1363 = vmatprep.subr.mxu0 0.0
    %1364 = vmatpush1.msra.mxu0 0.0
    %1365 = vmatprep.subr.mxu0 0.0
    %1366 = vmatpush1.msra.mxu0 0.0
    %1367 = vmatprep.subr.mxu0 0.0
    %1368 = vmatpush1.msra.mxu0 0.0
    %1369 = vmatprep.subr.mxu0 0.0
    %1370 = vmatpush1.msra.mxu0 0.0
    %1371 = vmatprep.subr.mxu0 0.0
    %1372 = vmatpush1.msra.mxu0 0.0
    %1373 = vmatprep.subr.mxu0 0.0
    %1374 = vmatpush1.msra.mxu0 0.0
    %1375 = vmatprep.subr.mxu0 0.0
    %1376 = vmatpush1.msra.mxu0 0.0
    %1377 = vmatprep.subr.mxu0 0.0
    %1378 = vmatpush1.msra.mxu0 0.0
    %1379 = vmatprep.subr.mxu0 0.0
    %1380 = vmatpush1.msra.mxu0 0.0
    %1381 = vmatprep.subr.mxu0 0.0
    %1382 = vmatpush1.msra.mxu0 0.0
    %1383 = vmatprep.subr.mxu0 0.0
    %1384 = vmatpush1.msra.mxu0 0.0
    %1385 = vmatprep.subr.mxu0 0.0
    %1386 = vmatpush1.msra.mxu0 0.0
    %1387 = vmatprep.subr.mxu0 0.0
    %1388 = vmatpush1.msra.mxu0 0.0
    %1389 = vmatprep.subr.mxu0 0.0
    %1390 = vmatpush1.msra.mxu0 0.0
    %1391 = vmatprep.subr.mxu0 0.0
    %1392 = vmatpush1.msra.mxu0 0.0
    %1393 = vmatprep.subr.mxu0 0.0
    %1394 = vmatpush1.msra.mxu0 0.0
    %1395 = vmatprep.subr.mxu0 0.0
    %1396 = vmatpush1.msra.mxu0 0.0
    %1397 = vmatprep.subr.mxu0 0.0
    %1398 = vmatpush1.msra.mxu0 0.0
    %1399 = vmatprep.subr.mxu0 0.0
    %1400 = vmatpush1.msra.mxu0 0.0
    %1401 = vmatprep.subr.mxu0 0.0
    %1402 = vmatpush1.msra.mxu0 0.0
    %1403 = vmatprep.mubr.f32.mxu0 0.0
    %1404 = vmatmul.mubr.f32.gmra.mrb[0].mxu0 %v1337
    %v1405 = vpop.f32.mrb[0].mxu0
    %v1406 = vadd.f32 %v1335, %v1405
    %v1407 = vpop.f32.mrb[0].mxu0
    %1408 = vdwg.mxu0
    %v1409 = vmax.f32 %v1406, 0.0
    %v1410 = vld [vmem:[#allocation3 + $0x130] sm:$0xff]
    %v1411 = vld [vmem:[#allocation3 + $0x138] sm:$0xff]
    %v1412 = vld [vmem:[#allocation3 + $0x140] sm:$0xff]
    %v1413 = vld [vmem:[#allocation3 + $0x167] sm:$0x1]
    %vm1414 = vcmask 195584
    %v1416 = vsel %vm1414, %v1409, 0
    %1418 = vmatprep.subr.mxu0 0.0
    %1419 = vmatpush1.msra.mxu0 %v1410
    %1420 = vmatprep.subr.mxu0 0.0
    %1421 = vmatpush1.msra.mxu0 %v1411
    %1422 = vmatprep.subr.mxu0 0.0
    %1423 = vmatpush1.msra.mxu0 %v1412
    %1424 = vmatprep.subr.mxu0 0.0
    %1425 = vmatpush1.msra.mxu0 0.0
    %1426 = vmatprep.subr.mxu0 0.0
    %1427 = vmatpush1.msra.mxu0 0.0
    %1428 = vmatprep.subr.mxu0 0.0
    %1429 = vmatpush1.msra.mxu0 0.0
    %1430 = vmatprep.subr.mxu0 0.0
    %1431 = vmatpush1.msra.mxu0 0.0
    %1432 = vmatprep.subr.mxu0 0.0
    %1433 = vmatpush1.msra.mxu0 0.0
    %1434 = vmatprep.subr.mxu0 0.0
    %1435 = vmatpush1.msra.mxu0 0.0
    %1436 = vmatprep.subr.mxu0 0.0
    %1437 = vmatpush1.msra.mxu0 0.0
    %1438 = vmatprep.subr.mxu0 0.0
    %1439 = vmatpush1.msra.mxu0 0.0
    %1440 = vmatprep.subr.mxu0 0.0
    %1441 = vmatpush1.msra.mxu0 0.0
    %1442 = vmatprep.subr.mxu0 0.0
    %1443 = vmatpush1.msra.mxu0 0.0
    %1444 = vmatprep.subr.mxu0 0.0
    %1445 = vmatpush1.msra.mxu0 0.0
    %1446 = vmatprep.subr.mxu0 0.0
    %1447 = vmatpush1.msra.mxu0 0.0
    %1448 = vmatprep.subr.mxu0 0.0
    %1449 = vmatpush1.msra.mxu0 0.0
    %1450 = vmatprep.subr.mxu0 0.0
    %1451 = vmatpush1.msra.mxu0 0.0
    %1452 = vmatprep.subr.mxu0 0.0
    %1453 = vmatpush1.msra.mxu0 0.0
    %1454 = vmatprep.subr.mxu0 0.0
    %1455 = vmatpush1.msra.mxu0 0.0
    %1456 = vmatprep.subr.mxu0 0.0
    %1457 = vmatpush1.msra.mxu0 0.0
    %1458 = vmatprep.subr.mxu0 0.0
    %1459 = vmatpush1.msra.mxu0 0.0
    %1460 = vmatprep.subr.mxu0 0.0
    %1461 = vmatpush1.msra.mxu0 0.0
    %1462 = vmatprep.subr.mxu0 0.0
    %1463 = vmatpush1.msra.mxu0 0.0
    %1464 = vmatprep.subr.mxu0 0.0
    %1465 = vmatpush1.msra.mxu0 0.0
    %1466 = vmatprep.subr.mxu0 0.0
    %1467 = vmatpush1.msra.mxu0 0.0
    %1468 = vmatprep.subr.mxu0 0.0
    %1469 = vmatpush1.msra.mxu0 0.0
    %1470 = vmatprep.subr.mxu0 0.0
    %1471 = vmatpush1.msra.mxu0 0.0
    %1472 = vmatprep.subr.mxu0 0.0
    %1473 = vmatpush1.msra.mxu0 0.0
    %1474 = vmatprep.subr.mxu0 0.0
    %1475 = vmatpush1.msra.mxu0 0.0
    %1476 = vmatprep.subr.mxu0 0.0
    %1477 = vmatpush1.msra.mxu0 0.0
    %1478 = vmatprep.subr.mxu0 0.0
    %1479 = vmatpush1.msra.mxu0 0.0
    %1480 = vmatprep.subr.mxu0 0.0
    %1481 = vmatpush1.msra.mxu0 0.0
    %1482 = vmatprep.mubr.f32.mxu0 0.0
    %1483 = vmatmul.mubr.f32.gmra.mrb[0].mxu0 %v1416
    %v1484 = vpop.f32.mrb[0].mxu0
    %v1485 = vadd.f32 %v1413, %v1484
    %v1486 = vpop.f32.mrb[0].mxu0
    %1487 = vdwg.mxu0
    %v1488 = vmax.f32 %v1485, 0.0
    %v1489 = vadd.f32 %v1488, %v49
    %v1490 = vld [vmem:[#allocation3 + $0x148] sm:$0xff]
    %v1491 = vld [vmem:[#allocation3 + $0x168] sm:$0x1]
    %v1493 = vsel %vm86, %v1489, 0
    %1495 = vmatprep.subr.mxu0 0.0
    %1496 = vmatpush1.msra.mxu0 %v1490
    %1497 = vmatprep.subr.mxu0 0.0
    %1498 = vmatpush1.msra.mxu0 0.0
    %1499 = vmatprep.subr.mxu0 0.0
    %1500 = vmatpush1.msra.mxu0 0.0
    %1501 = vmatprep.subr.mxu0 0.0
    %1502 = vmatpush1.msra.mxu0 0.0
    %1503 = vmatprep.subr.mxu0 0.0
    %1504 = vmatpush1.msra.mxu0 0.0
    %1505 = vmatprep.subr.mxu0 0.0
    %1506 = vmatpush1.msra.mxu0 0.0
    %1507 = vmatprep.subr.mxu0 0.0
    %1508 = vmatpush1.msra.mxu0 0.0
    %1509 = vmatprep.subr.mxu0 0.0
    %1510 = vmatpush1.msra.mxu0 0.0
    %1511 = vmatprep.subr.mxu0 0.0
    %1512 = vmatpush1.msra.mxu0 0.0
    %1513 = vmatprep.subr.mxu0 0.0
    %1514 = vmatpush1.msra.mxu0 0.0
    %1515 = vmatprep.subr.mxu0 0.0
    %1516 = vmatpush1.msra.mxu0 0.0
    %1517 = vmatprep.subr.mxu0 0.0
    %1518 = vmatpush1.msra.mxu0 0.0
    %1519 = vmatprep.subr.mxu0 0.0
    %1520 = vmatpush1.msra.mxu0 0.0
    %1521 = vmatprep.subr.mxu0 0.0
    %1522 = vmatpush1.msra.mxu0 0.0
    %1523 = vmatprep.subr.mxu0 0.0
    %1524 = vmatpush1.msra.mxu0 0.0
    %1525 = vmatprep.subr.mxu0 0.0
    %1526 = vmatpush1.msra.mxu0 0.0
    %1527 = vmatprep.subr.mxu0 0.0
    %1528 = vmatpush1.msra.mxu0 0.0
    %1529 = vmatprep.subr.mxu0 0.0
    %1530 = vmatpush1.msra.mxu0 0.0
    %1531 = vmatprep.subr.mxu0 0.0
    %1532 = vmatpush1.msra.mxu0 0.0
    %1533 = vmatprep.subr.mxu0 0.0
    %1534 = vmatpush1.msra.mxu0 0.0
    %1535 = vmatprep.subr.mxu0 0.0
    %1536 = vmatpush1.msra.mxu0 0.0
    %1537 = vmatprep.subr.mxu0 0.0
    %1538 = vmatpush1.msra.mxu0 0.0
    %1539 = vmatprep.subr.mxu0 0.0
    %1540 = vmatpush1.msra.mxu0 0.0
    %1541 = vmatprep.subr.mxu0 0.0
    %1542 = vmatpush1.msra.mxu0 0.0
    %1543 = vmatprep.subr.mxu0 0.0
    %1544 = vmatpush1.msra.mxu0 0.0
    %1545 = vmatprep.subr.mxu0 0.0
    %1546 = vmatpush1.msra.mxu0 0.0
    %1547 = vmatprep.subr.mxu0 0.0
    %1548 = vmatpush1.msra.mxu0 0.0
    %1549 = vmatprep.subr.mxu0 0.0
    %1550 = vmatpush1.msra.mxu0 0.0
    %1551 = vmatprep.subr.mxu0 0.0
    %1552 = vmatpush1.msra.mxu0 0.0
    %1553 = vmatprep.subr.mxu0 0.0
    %1554 = vmatpush1.msra.mxu0 0.0
    %1555 = vmatprep.subr.mxu0 0.0
    %1556 = vmatpush1.msra.mxu0 0.0
    %1557 = vmatprep.subr.mxu0 0.0
    %1558 = vmatpush1.msra.mxu0 0.0
    %1559 = vmatprep.mubr.f32.mxu0 0.0
    %1560 = vmatmul.mubr.f32.gmra.mrb[0].mxu0 %v1493
    %v1561 = vpop.f32.mrb[0].mxu0
    %v1562 = vadd.f32 %v1491, %v1561
    %v1563 = vpop.f32.mrb[0].mxu0
    %1564 = vdwg.mxu0
    %v1565 = vmax.f32 %v1562, 0.0
    %v1566 = vld [vmem:[#allocation3 + $0x150] sm:$0xff]
    %v1567 = vld [vmem:[#allocation3 + $0x158] sm:$0xff]
    %v1568 = vld [vmem:[#allocation3 + $0x169] sm:$0x1]
    %vm1569 = vcmask 130048
    %v1571 = vsel %vm1569, %v1565, 0
    %1573 = vmatprep.subr.mxu0 0.0
    %1574 = vmatpush1.msra.mxu0 %v1566
    %1575 = vmatprep.subr.mxu0 0.0
    %1576 = vmatpush1.msra.mxu0 %v1567
    %1577 = vmatprep.subr.mxu0 0.0
    %1578 = vmatpush1.msra.mxu0 0.0
    %1579 = vmatprep.subr.mxu0 0.0
    %1580 = vmatpush1.msra.mxu0 0.0
    %1581 = vmatprep.subr.mxu0 0.0
    %1582 = vmatpush1.msra.mxu0 0.0
    %1583 = vmatprep.subr.mxu0 0.0
    %1584 = vmatpush1.msra.mxu0 0.0
    %1585 = vmatprep.subr.mxu0 0.0
    %1586 = vmatpush1.msra.mxu0 0.0
    %1587 = vmatprep.subr.mxu0 0.0
    %1588 = vmatpush1.msra.mxu0 0.0
    %1589 = vmatprep.subr.mxu0 0.0
    %1590 = vmatpush1.msra.mxu0 0.0
    %1591 = vmatprep.subr.mxu0 0.0
    %1592 = vmatpush1.msra.mxu0 0.0
    %1593 = vmatprep.subr.mxu0 0.0
    %1594 = vmatpush1.msra.mxu0 0.0
    %1595 = vmatprep.subr.mxu0 0.0
    %1596 = vmatpush1.msra.mxu0 0.0
    %1597 = vmatprep.subr.mxu0 0.0
    %1598 = vmatpush1.msra.mxu0 0.0
    %1599 = vmatprep.subr.mxu0 0.0
    %1600 = vmatpush1.msra.mxu0 0.0
    %1601 = vmatprep.subr.mxu0 0.0
    %1602 = vmatpush1.msra.mxu0 0.0
    %1603 = vmatprep.subr.mxu0 0.0
    %1604 = vmatpush1.msra.mxu0 0.0
    %1605 = vmatprep.subr.mxu0 0.0
    %1606 = vmatpush1.msra.mxu0 0.0
    %1607 = vmatprep.subr.mxu0 0.0
    %1608 = vmatpush1.msra.mxu0 0.0
    %1609 = vmatprep.subr.mxu0 0.0
    %1610 = vmatpush1.msra.mxu0 0.0
    %1611 = vmatprep.subr.mxu0 0.0
    %1612 = vmatpush1.msra.mxu0 0.0
    %1613 = vmatprep.subr.mxu0 0.0
    %1614 = vmatpush1.msra.mxu0 0.0
    %1615 = vmatprep.subr.mxu0 0.0
    %1616 = vmatpush1.msra.mxu0 0.0
    %1617 = vmatprep.subr.mxu0 0.0
    %1618 = vmatpush1.msra.mxu0 0.0
    %1619 = vmatprep.subr.mxu0 0.0
    %1620 = vmatpush1.msra.mxu0 0.0
    %1621 = vmatprep.subr.mxu0 0.0
    %1622 = vmatpush1.msra.mxu0 0.0
    %1623 = vmatprep.subr.mxu0 0.0
    %1624 = vmatpush1.msra.mxu0 0.0
    %1625 = vmatprep.subr.mxu0 0.0
    %1626 = vmatpush1.msra.mxu0 0.0
    %1627 = vmatprep.subr.mxu0 0.0
    %1628 = vmatpush1.msra.mxu0 0.0
    %1629 = vmatprep.subr.mxu0 0.0
    %1630 = vmatpush1.msra.mxu0 0.0
    %1631 = vmatprep.subr.mxu0 0.0
    %1632 = vmatpush1.msra.mxu0 0.0
    %1633 = vmatprep.subr.mxu0 0.0
    %1634 = vmatpush1.msra.mxu0 0.0
    %1635 = vmatprep.subr.mxu0 0.0
    %1636 = vmatpush1.msra.mxu0 0.0
    %1637 = vmatprep.mubr.f32.mxu0 0.0
    %1638 = vmatmul.mubr.f32.gmra.mrb[0].mxu0 %v1571
    %v1639 = vpop.f32.mrb[0].mxu0
    %v1640 = vadd.f32 %v1568, %v1639
    %v1641 = vpop.f32.mrb[0].mxu0
    %1642 = vdwg.mxu0
    %vm1643 = vcmask 57344
    %v1644 = vsel %vm1643, %v1640, -inf
    %1645 = vmax.xlane.f32.xlu0 %v1644
    %v1646 = vpop.xlane.xlu0 %1645
    %v1647 = vsub.f32 %v1640, %v1646
    %v1648 = vmul.f32 %v1647, 1.442695
    %v1649 = vpow.pop %v1648
    %v1650 = vsel %vm1643, %v1649, 0.0
    %1651 = vadd.xlane.f32.xlu0 %v1650
    %v1652 = vpop.xlane.xlu0 %1651
    %v1653 = vrcp.pop %v1652
    %v1654 = vmul.f32 %v1652, %v1653
    %v1655 = vsub.f32 2.0, %v1654
    %v1656 = vmul.f32 %v1653, %v1655
    %v1657 = vmul.f32 %v1649, %v1656
    %1658 = vst.msk [vmem:[#allocation8] sm:$0x1] %vm1643, %v1657
    // Predicated region
    $region30: #{forward.1} parent=1 // pred_check
      _
    $region31: #{forward.1} parent=1 // pred_check_branch
      %1660 = sbr.rel (0) target = $region33
    $region32: #{forward.1} parent=1 // pred_region
      %s1662 = ssub.s32 16, 16
      %1663 = vsyncadd [#allocation5], %s1662
      %s1665 = sshll.u32 [#allocation8], 4
      %s1666 = int_to_ptr.vmem [resolvable:$true] %s1665
      %1668 = dma.vmem_to_hbm [thread:$0]  %s1666, 16, %s5, [#allocation5]
    $region33: #{forward.1} parent=1 // pred_fallthru
      _
    // Predicated region
    $region34: #{forward.1} parent=1 // pred_check
      _
    $region35: #{forward.1} parent=1 // pred_check_branch
      %1670 = sbr.rel (0) target = $region37
    $region36: #{forward.1} parent=1 // pred_region
      %1671 = dma.done [#allocation5], 16
    $region37: #{forward.1} parent=1 // pred_fallthru
      _
    %1672 = vsyncpa [#allocation4], 1
    %1673 = vsyncpa [#allocation7], 1
    %1674 = vsyncpa [#allocation5], 1

</llo_original>
